<compile_context>
chip_gen: v7x
topology: tpu7x:2x2x1
jax: 0.10.0
libtpu: 0.0.40
codegen_flags: <defaults>
</compile_context>

<pallas_src>
import functools

import jax
import jax.numpy as jnp
from jax.experimental import pallas as pl
from jax.experimental.pallas import tpu as pltpu

NEG_INF = -1e30  # large-negative additive mask bias (absorbs any finite score in f32)


# --------------------------------------------------------------------------------------
# kernel helpers
# --------------------------------------------------------------------------------------
def _scores_attn(x, amat_ref, cvec_ref, tsum_ref, texp_ref, *, S, H):
    """Per-head attention weights, lane-dense (Bblk, S*H) layout, column c = s*H + h."""
    # scores[b, s*H+h] = q_h . k[b,s,h] / sqrt(hd) + mask_bias[b,s]  (all folded into amat/cvec)
    scores = jnp.dot(x, amat_ref[...], preferred_element_type=jnp.float32) + cvec_ref[...]
    # exact per-head max over the sequence axis: cyclic lane-shift doubling tree
    # (each head's coset {c : c % H == h} is closed under cyclic shifts by multiples of H).
    m = scores
    span = 1
    while span < S:
        sh = span * H
        m = jnp.maximum(m, jnp.concatenate([m[:, sh:], m[:, :sh]], axis=-1))
        span *= 2
    p = jnp.exp(scores - m)                                                     # (Bblk, S*H)
    denom = jnp.dot(p, tsum_ref[...], preferred_element_type=jnp.float32)       # (Bblk, H), >= 1
    rden = pl.reciprocal(denom, approx=True)                                    # EUP slot
    return p * jnp.dot(rden, texp_ref[...], preferred_element_type=jnp.float32)


def _norm_proj(g, gamma_ref, beta_ref, wp_ref, bp_ref):
    """LayerNorm (eps=1e-5, biased variance) followed by the final Linear."""
    mu = jnp.mean(g, axis=-1, keepdims=True)
    gc = g - mu
    var = jnp.mean(gc * gc, axis=-1, keepdims=True)
    gn = gc * jax.lax.rsqrt(var + 1e-5) * gamma_ref[...] + beta_ref[...]
    return jnp.dot(gn, wp_ref[...], preferred_element_type=jnp.float32) + bp_ref[...]


def _attn_pool_mha_kernel(x_ref, amat_ref, cvec_ref, tsum_ref, texp_ref,
                          wv_ref, bv_ref, mexp_ref, wo_ref, bo_ref,
                          gamma_ref, beta_ref, wp_ref, bp_ref,
                          out_ref, attn_ref, *, S, H):
    x = x_ref[...]                                                              # (Bblk, S*Ea) bf16
    attn = _scores_attn(x, amat_ref, cvec_ref, tsum_ref, texp_ref, S=S, H=H)
    attn_ref[...] = attn                                                        # lane-dense store
    # V projection in the packed (Bblk, S*E) layout (bf16 operands, f32 accumulate)
    v = jnp.dot(x, wv_ref[...], preferred_element_type=jnp.float32) + bv_ref[...]
    # expand per-head attention across its head's lanes, weight V, and fold the sum over S
    # together with the MHA out_proj into one stacked matmul.
    aexp = jnp.dot(attn, mexp_ref[...], preferred_element_type=jnp.float32)     # (Bblk, S*E)
    g = jnp.dot(aexp * v, wo_ref[...], preferred_element_type=jnp.float32) + bo_ref[...]
    out_ref[...] = _norm_proj(g, gamma_ref, beta_ref, wp_ref, bp_ref)


def _attn_pool_ew_kernel(x_ref, amat_ref, cvec_ref, tsum_ref, texp_ref,
                         selh0_ref, selew_ref, expx_ref, rsumx_ref,
                         gamma_ref, beta_ref, wp_ref, bp_ref,
                         out_ref, attn_ref, *, S, H):
    x = x_ref[...]                                                              # (Bblk, S*Ea) bf16
    attn = _scores_attn(x, amat_ref, cvec_ref, tsum_ref, texp_ref, S=S, H=H)
    attn_ref[...] = attn
    # stoichiometric re-weighting path: V / out_proj are dead here and are not even streamed
    attn_h0 = jnp.dot(attn, selh0_ref[...], preferred_element_type=jnp.float32)  # (Bblk, S)
    ew = jnp.dot(x, selew_ref[...], preferred_element_type=jnp.float32)          # (Bblk, S)
    comb = attn_h0 * ew
    denom = jnp.maximum(jnp.sum(comb, axis=-1, keepdims=True), 1e-10)
    comb = comb * pl.reciprocal(denom, approx=True)
    cexp = jnp.dot(comb, expx_ref[...], preferred_element_type=jnp.float32)      # (Bblk, S*Ea)
    g = jnp.dot(cexp * x.astype(jnp.float32), rsumx_ref[...],
                preferred_element_type=jnp.float32)                              # (Bblk, E)
    out_ref[...] = _norm_proj(g, gamma_ref, beta_ref, wp_ref, bp_ref)


# --------------------------------------------------------------------------------------
# wrapper
# --------------------------------------------------------------------------------------
def attention_pooling(x, params, element_weights=None, mask=None, *,
                      num_heads=4, batch_block=1024):
    """x: [B, S, E] f32. Returns (pooled [B, E], attention_weights [B, H, 1, S])."""
    B, S, E = x.shape
    H = num_heads
    hd = E // H
    f32, bf16 = jnp.float32, jnp.bfloat16
    (cv, wq, bq, wk, bk, wv, bv, wo, bo, gamma, beta, wp, bp) = params
    use_ew = element_weights is not None

    n_extra = 2 if use_ew else 1        # packed lanes per position: [mask bias] (+ [elem weight])
    Ea = E + n_extra
    SEa, SE, SH = S * Ea, S * E, S * H

    # ---- batch-independent preprocessing (runs exactly once, in XLA) ----
    q = (cv @ wq.T + bq) * (1.0 / jnp.sqrt(f32(hd)))                          # pre-scaled query (E,)
    msum = (jnp.arange(E, dtype=jnp.int32)[:, None] // hd
            == jnp.arange(H, dtype=jnp.int32)[None, :]).astype(f32)           # (E, H)
    A = (wk.T * q[None, :]) @ msum                                             # folded K-proj + q.k (E, H)
    c = (bk * q) @ msum                                                        # folded K-bias + q.k (H,)

    eyeS = jnp.eye(S, dtype=f32)
    a_aug = jnp.concatenate([A, jnp.ones((1, H), f32),
                             jnp.zeros((n_extra - 1, H), f32)], axis=0)        # (Ea, H)
    amat = jnp.kron(eyeS, a_aug).astype(bf16)                                  # (SEa, SH)
    cvec = jnp.tile(c, S).reshape(1, SH).astype(f32)                           # (1, SH)
    tsum = jnp.tile(jnp.eye(H, dtype=f32), (S, 1))                             # (SH, H) sum over s
    texp = tsum.T                                                              # (H, SH) expand over s

    gamma2 = gamma.reshape(1, E).astype(f32)
    beta2 = beta.reshape(1, E).astype(f32)
    wpT = wp.T.astype(f32)
    bp2 = bp.reshape(1, E).astype(f32)

    # ---- pack mask bias (and element weights) into spare lanes of x, lane-dense bf16 ----
    mask_f = jnp.zeros((B, S), f32) if mask is None else mask.astype(f32)
    lanes = [x.astype(f32), (mask_f * NEG_INF)[..., None]]
    if use_ew:
        lanes.append((element_weights.astype(f32) * (1.0 - mask_f))[..., None])
    x_aug = jnp.concatenate(lanes, axis=-1).reshape(B, SEa).astype(bf16)       # (B, S*Ea)

    # ---- batch blocking: amortise per-step overhead, keep >= 2 steps for v7x megacore ----
    batch_block = max(16, (batch_block // 16) * 16)
    target = batch_block
    if B > 64:
        target = min(target, ((B + 1) // 2 + 15) // 16 * 16)   # at least 2 grid steps
    Bblk = B if B <= target else target
    Bp = ((B + Bblk - 1) // Bblk) * Bblk
    if Bp != B:
        x_aug = jnp.pad(x_aug, ((0, Bp - B), (0, 0)))
    nb = Bp // Bblk

    const2 = lambda i: (0, 0)
    batch2 = lambda i: (i, 0)
    full = lambda shape: pl.BlockSpec(shape, const2)   # resident constant block

    common_args = (x_aug, amat, cvec, tsum, texp)
    common_specs = [pl.BlockSpec((Bblk, SEa), batch2),
                    full((SEa, SH)), full((1, SH)), full((SH, H)), full((H, SH))]
    tail_args = (gamma2, beta2, wpT, bp2)
    tail_specs = [full((1, E)), full((1, E)), full((E, E)), full((1, E))]

    if use_ew:
        # head-0 / element-weight selectors + expand / reduce matrices for the packed layout
        selh0 = jnp.kron(eyeS, jnp.eye(H, 1, dtype=f32))                       # (SH, S)
        u = jnp.zeros((Ea, 1), f32).at[E + 1, 0].set(1.0)
        selew = jnp.kron(eyeS, u).astype(bf16)                                 # (SEa, S)
        expx = jnp.kron(eyeS, jnp.concatenate(
            [jnp.ones((1, E), f32), jnp.zeros((1, n_extra), f32)], axis=1))    # (S, SEa)
        rsumx = jnp.kron(jnp.ones((S, 1), f32), jnp.concatenate(
            [jnp.eye(E, dtype=f32), jnp.zeros((n_extra, E), f32)], axis=0))    # (SEa, E)
        mid_args = (selh0, selew, expx, rsumx)
        mid_specs = [full((SH, S)), full((SEa, S)), full((S, SEa)), full((SEa, E))]
        kern = functools.partial(_attn_pool_ew_kernel, S=S, H=H)
    else:
        wv_bd = jnp.kron(eyeS, jnp.concatenate(
            [wv.T, jnp.zeros((n_extra, E), f32)], axis=0)).astype(bf16)        # (SEa, SE)
        bv_t = jnp.tile(bv, S).reshape(1, SE).astype(f32)                      # (1, SE)
        mexp_bd = jnp.kron(eyeS, msum.T)                                       # (SH, SE)
        wo_stack = jnp.tile(wo.T, (S, 1)).astype(f32)                          # (SE, E)
        bo2 = bo.reshape(1, E).astype(f32)
        mid_args = (wv_bd, bv_t, mexp_bd, wo_stack, bo2)
        mid_specs = [full((SEa, SE)), full((1, SE)), full((SH, SE)),
                     full((SE, E)), full((1, E))]
        kern = functools.partial(_attn_pool_mha_kernel, S=S, H=H)

    # advisory cost estimate for the XLA scheduler
    flops_row = 2 * SEa * SH + 2 * E * E + 12 * E + 6 * SH
    if use_ew:
        flops_row += 4 * SEa * S + 2 * SH * S + 2 * SEa * E
    else:
        flops_row += 2 * SEa * SE + 2 * SH * SE + 2 * SE * E
    cost = pl.CostEstimate(
        flops=int(Bp * flops_row),
        transcendentals=int(Bp * (SH + H + 2)),
        bytes_accessed=int(Bp * (2 * SEa + 4 * (E + SH))
                           + 4 * (SEa * SH + SEa * SE + SH * SE + SE * E + E * E + 8 * E)),
    )

    out, attn = pl.pallas_call(
        kern,
        out_shape=(jax.ShapeDtypeStruct((Bp, E), f32),
                   jax.ShapeDtypeStruct((Bp, SH), f32)),
        grid=(nb,),
        in_specs=common_specs + mid_specs + tail_specs,
        out_specs=[pl.BlockSpec((Bblk, E), batch2),
                   pl.BlockSpec((Bblk, SH), batch2)],
        compiler_params=pltpu.CompilerParams(
            dimension_semantics=("parallel",),
            vmem_limit_bytes=32 * 1024 * 1024),
        cost_estimate=cost,
    )(*common_args, *mid_args, *tail_args)

    pooled = out[:B]
    attn_w = attn[:B].reshape(B, S, H).transpose(0, 2, 1).reshape(B, H, 1, S)
    return pooled, attn_w


# --------------------------------------------------------------------------------------
# pure-JAX reference mirroring the PyTorch module semantics
# --------------------------------------------------------------------------------------
def attention_pooling_reference(x, params, element_weights=None, mask=None, *, num_heads=4):
    B, S, E = x.shape
    hd = E // num_heads
    (cv, wq, bq, wk, bk, wv, bv, wo, bo, gamma, beta, wp, bp) = params

    q = cv @ wq.T + bq
    k = x @ wk.T + bk
    v = x @ wv.T + bv
    q_h = q.reshape(num_heads, hd)
    k_h = k.reshape(B, S, num_heads, hd)
    v_h = v.reshape(B, S, num_heads, hd)
    scores = jnp.einsum('hd,bshd->bhs', q_h, k_h) / jnp.sqrt(jnp.float32(hd))
    if mask is not None:
        scores = jnp.where(mask[:, None, :], NEG_INF, scores)
    attn = jax.nn.softmax(scores, axis=-1)               # (B, H, S)
    ctx = jnp.einsum('bhs,bshd->bhd', attn, v_h).reshape(B, E)
    attn_out = ctx @ wo.T + bo

    if element_weights is not None:
        ew = element_weights
        if mask is not None:
            ew = ew * (1.0 - mask.astype(jnp.float32))
        comb = attn[:, 0, :] * ew
        comb = comb / jnp.maximum(jnp.sum(comb, axis=-1, keepdims=True), 1e-10)
        g = jnp.einsum('bs,bse->be', comb, x)
    else:
        g = attn_out

    mu = jnp.mean(g, axis=-1, keepdims=True)
    var = jnp.mean((g - mu) ** 2, axis=-1, keepdims=True)
    g_n = (g - mu) / jnp.sqrt(var + 1e-5) * gamma + beta
    out = g_n @ wp.T + bp
    return out, attn.reshape(B, num_heads, 1, S)


def init_params(key, E):
    ks = jax.random.split(key, 13)
    s = 0.1
    cv = jax.random.normal(ks[0], (E,), jnp.float32)
    wq = jax.random.normal(ks[1], (E, E), jnp.float32) * s
    wk = jax.random.normal(ks[2], (E, E), jnp.float32) * s
    wv = jax.random.normal(ks[3], (E, E), jnp.float32) * s
    bq = jax.random.normal(ks[4], (E,), jnp.float32) * s
    bk = jax.random.normal(ks[5], (E,), jnp.float32) * s
    bv = jax.random.normal(ks[6], (E,), jnp.float32) * s
    wo = jax.random.normal(ks[7], (E, E), jnp.float32) * s
    bo = jax.random.normal(ks[8], (E,), jnp.float32) * s
    gamma = 1.0 + jax.random.normal(ks[9], (E,), jnp.float32) * 0.05
    beta = jax.random.normal(ks[10], (E,), jnp.float32) * 0.05
    wp = jax.random.normal(ks[11], (E, E), jnp.float32) * s
    bp = jax.random.normal(ks[12], (E,), jnp.float32) * s
    return (cv, wq, bq, wk, bk, wv, bv, wo, bo, gamma, beta, wp, bp)


if __name__ == "__main__":
    B, S, E, H = 2, 8, 32, 4

    key = jax.random.PRNGKey(0)
    k_x, k_w, k_p, k_x2, k_m2 = jax.random.split(key, 5)
    x = jax.random.normal(k_x, (B, S, E), jnp.float32)
    element_weights = jax.random.uniform(k_w, (B, S), jnp.float32, 0.5, 1.5)
    mask = jnp.zeros((B, S), dtype=bool).at[:, -2:].set(True)  # True == padding
    params = init_params(k_p, E)

    tol = dict(rtol=2e-2, atol=2e-2)

    # Path 1: plain MHA pooling
    out1, attn1 = attention_pooling(x, params, None, mask, num_heads=H)
    out1 = jax.block_until_ready(out1)
    attn1 = jax.block_until_ready(attn1)
    r_out1, r_attn1 = attention_pooling_reference(x, params, None, mask, num_heads=H)

    # Path 2: stoichiometric re-weighting (element_weights supplied)
    out2, attn2 = attention_pooling(x, params, element_weights, mask, num_heads=H)
    out2 = jax.block_until_ready(out2)
    attn2 = jax.block_until_ready(attn2)
    r_out2, r_attn2 = attention_pooling_reference(x, params, element_weights, mask, num_heads=H)

    assert out1.shape == (B, E) and attn1.shape == (B, H, 1, S)
    assert out2.shape == (B, E) and attn2.shape == (B, H, 1, S)
    assert bool(jnp.all(jnp.isfinite(out1))) and bool(jnp.all(jnp.isfinite(attn1)))
    assert bool(jnp.all(jnp.isfinite(out2))) and bool(jnp.all(jnp.isfinite(attn2)))
    assert jnp.allclose(out1, r_out1, **tol), "pooled output mismatch (mha path)"
    assert jnp.allclose(attn1, r_attn1, **tol), "attention weights mismatch (mha path)"
    assert jnp.allclose(out2, r_out2, **tol), "pooled output mismatch (ew path)"
    assert jnp.allclose(attn2, r_attn2, **tol), "attention weights mismatch (ew path)"

    # Path 3: multi-block grid (exercises batch blocking + padding at a small shape)
    B3 = 40
    x3 = jax.random.normal(k_x2, (B3, S, E), jnp.float32)
    mask3 = (jax.random.uniform(k_m2, (B3, S)) < 0.2).at[:, 0].set(False)
    out3, attn3 = attention_pooling(x3, params, None, mask3, num_heads=H, batch_block=16)
    out3 = jax.block_until_ready(out3)
    attn3 = jax.block_until_ready(attn3)
    r_out3, r_attn3 = attention_pooling_reference(x3, params, None, mask3, num_heads=H)
    assert out3.shape == (B3, E) and attn3.shape == (B3, H, 1, S)
    assert jnp.allclose(out3, r_out3, **tol), "pooled output mismatch (multi-block)"
    assert jnp.allclose(attn3, r_attn3, **tol), "attention weights mismatch (multi-block)"

    print("KERNEL_OK")
</pallas_src>

<mosaic_0001>
module attributes {stable_mosaic.version = 11 : i64} {
  func.func @_attn_pool_mha_kernel(%arg0: i32, %arg1: memref<2x264xbf16, #tpu.memory_space<vmem>>, %arg2: memref<264x32xbf16, #tpu.memory_space<vmem>>, %arg3: memref<1x32xf32, #tpu.memory_space<vmem>>, %arg4: memref<32x4xf32, #tpu.memory_space<vmem>>, %arg5: memref<4x32xf32, #tpu.memory_space<vmem>>, %arg6: memref<264x256xbf16, #tpu.memory_space<vmem>>, %arg7: memref<1x256xf32, #tpu.memory_space<vmem>>, %arg8: memref<32x256xf32, #tpu.memory_space<vmem>>, %arg9: memref<256x32xf32, #tpu.memory_space<vmem>>, %arg10: memref<1x32xf32, #tpu.memory_space<vmem>>, %arg11: memref<1x32xf32, #tpu.memory_space<vmem>>, %arg12: memref<1x32xf32, #tpu.memory_space<vmem>>, %arg13: memref<32x32xf32, #tpu.memory_space<vmem>>, %arg14: memref<1x32xf32, #tpu.memory_space<vmem>>, %arg15: memref<2x32xf32, #tpu.memory_space<vmem>>, %arg16: memref<2x32xf32, #tpu.memory_space<vmem>>) attributes {dimension_semantics = [#tpu.dimension_semantics<parallel>], iteration_bounds = array<i64: 1>, scalar_prefetch = 0 : i64, scratch_operands = 0 : i64, tpu.core_type = #tpu.core_type<tc>, window_params = [{transform_indices = @transform_0, window_bounds = array<i64: 2, 264>}, {pipeline_mode = #tpu.pipeline_mode<synchronous>, transform_indices = @transform_1, window_bounds = array<i64: 264, 32>}, {pipeline_mode = #tpu.pipeline_mode<synchronous>, transform_indices = @transform_2, window_bounds = array<i64: 1, 32>}, {pipeline_mode = #tpu.pipeline_mode<synchronous>, transform_indices = @transform_3, window_bounds = array<i64: 32, 4>}, {pipeline_mode = #tpu.pipeline_mode<synchronous>, transform_indices = @transform_4, window_bounds = array<i64: 4, 32>}, {pipeline_mode = #tpu.pipeline_mode<synchronous>, transform_indices = @transform_5, window_bounds = array<i64: 264, 256>}, {pipeline_mode = #tpu.pipeline_mode<synchronous>, transform_indices = @transform_6, window_bounds = array<i64: 1, 256>}, {pipeline_mode = #tpu.pipeline_mode<synchronous>, transform_indices = @transform_7, window_bounds = array<i64: 32, 256>}, {pipeline_mode = #tpu.pipeline_mode<synchronous>, transform_indices = @transform_8, window_bounds = array<i64: 256, 32>}, {pipeline_mode = #tpu.pipeline_mode<synchronous>, transform_indices = @transform_9, window_bounds = array<i64: 1, 32>}, {pipeline_mode = #tpu.pipeline_mode<synchronous>, transform_indices = @transform_10, window_bounds = array<i64: 1, 32>}, {pipeline_mode = #tpu.pipeline_mode<synchronous>, transform_indices = @transform_11, window_bounds = array<i64: 1, 32>}, {pipeline_mode = #tpu.pipeline_mode<synchronous>, transform_indices = @transform_12, window_bounds = array<i64: 32, 32>}, {pipeline_mode = #tpu.pipeline_mode<synchronous>, transform_indices = @transform_13, window_bounds = array<i64: 1, 32>}, {transform_indices = @transform_14, window_bounds = array<i64: 2, 32>}, {transform_indices = @transform_15, window_bounds = array<i64: 2, 32>}]} {
    %c0 = arith.constant 0 : index
    %c0_0 = arith.constant 0 : index
    %0 = vector.load %arg1[%c0, %c0_0] : memref<2x264xbf16, #tpu.memory_space<vmem>>, vector<2x264xbf16>
    %c0_1 = arith.constant 0 : index
    %c0_2 = arith.constant 0 : index
    %1 = vector.load %arg2[%c0_1, %c0_2] : memref<264x32xbf16, #tpu.memory_space<vmem>>, vector<264x32xbf16>
    %cst = arith.constant dense<0.000000e+00> : vector<2x32xf32>
    %2 = tpu.matmul %0, %1, %cst {dimension_numbers = #tpu.dot_dimension_numbers<[1], [0], [0], [1], [0, 0, 1, 1], [], []>} : vector<2x264xbf16>, vector<264x32xbf16>, vector<2x32xf32> -> vector<2x32xf32>
    %c0_3 = arith.constant 0 : index
    %c0_4 = arith.constant 0 : index
    %3 = vector.load %arg3[%c0_3, %c0_4] : memref<1x32xf32, #tpu.memory_space<vmem>>, vector<1x32xf32>
    %4 = vector.broadcast %3 : vector<1x32xf32> to vector<2x32xf32>
    %5 = arith.addf %2, %4 : vector<2x32xf32>
    %6 = vector.extract_strided_slice %5 {offsets = [0, 4], sizes = [2, 28], strides = [1, 1]} : vector<2x32xf32> to vector<2x28xf32>
    %7 = vector.extract_strided_slice %5 {offsets = [0, 0], sizes = [2, 4], strides = [1, 1]} : vector<2x32xf32> to vector<2x4xf32>
    %8 = tpu.concatenate %6, %7 in 1 : vector<2x28xf32>, vector<2x4xf32> -> vector<2x32xf32>
    %9 = arith.maximumf %5, %8 : vector<2x32xf32>
    %10 = vector.extract_strided_slice %9 {offsets = [0, 8], sizes = [2, 24], strides = [1, 1]} : vector<2x32xf32> to vector<2x24xf32>
    %11 = vector.extract_strided_slice %9 {offsets = [0, 0], sizes = [2, 8], strides = [1, 1]} : vector<2x32xf32> to vector<2x8xf32>
    %12 = tpu.concatenate %10, %11 in 1 : vector<2x24xf32>, vector<2x8xf32> -> vector<2x32xf32>
    %13 = arith.maximumf %9, %12 : vector<2x32xf32>
    %14 = vector.extract_strided_slice %13 {offsets = [0, 16], sizes = [2, 16], strides = [1, 1]} : vector<2x32xf32> to vector<2x16xf32>
    %15 = vector.extract_strided_slice %13 {offsets = [0, 0], sizes = [2, 16], strides = [1, 1]} : vector<2x32xf32> to vector<2x16xf32>
    %16 = tpu.concatenate %14, %15 in 1 : vector<2x16xf32>, vector<2x16xf32> -> vector<2x32xf32>
    %17 = arith.maximumf %13, %16 : vector<2x32xf32>
    %18 = arith.subf %5, %17 : vector<2x32xf32>
    %19 = math.exp %18 : vector<2x32xf32>
    %c0_5 = arith.constant 0 : index
    %c0_6 = arith.constant 0 : index
    %20 = vector.load %arg4[%c0_5, %c0_6] : memref<32x4xf32, #tpu.memory_space<vmem>>, vector<32x4xf32>
    %cst_7 = arith.constant dense<0.000000e+00> : vector<2x4xf32>
    %21 = tpu.matmul %19, %20, %cst_7 {dimension_numbers = #tpu.dot_dimension_numbers<[1], [0], [0], [1], [0, 0, 1, 1], [], []>} : vector<2x32xf32>, vector<32x4xf32>, vector<2x4xf32> -> vector<2x4xf32>
    %22 = tpu.reciprocal %21 {approx = true} : vector<2x4xf32> -> vector<2x4xf32>
    %c0_8 = arith.constant 0 : index
    %c0_9 = arith.constant 0 : index
    %23 = vector.load %arg5[%c0_8, %c0_9] : memref<4x32xf32, #tpu.memory_space<vmem>>, vector<4x32xf32>
    %cst_10 = arith.constant dense<0.000000e+00> : vector<2x32xf32>
    %24 = tpu.matmul %22, %23, %cst_10 {dimension_numbers = #tpu.dot_dimension_numbers<[1], [0], [0], [1], [0, 0, 1, 1], [], []>} : vector<2x4xf32>, vector<4x32xf32>, vector<2x32xf32> -> vector<2x32xf32>
    %25 = arith.mulf %19, %24 : vector<2x32xf32>
    %c0_11 = arith.constant 0 : index
    %c0_12 = arith.constant 0 : index
    %26 = vector.load %arg16[%c0_11, %c0_12] : memref<2x32xf32, #tpu.memory_space<vmem>>, vector<2x32xf32>
    tpu.vector_store %arg16[%c0_11, %c0_12], %25 {strides = array<i32>} : memref<2x32xf32, #tpu.memory_space<vmem>>, vector<2x32xf32>,
    %c0_13 = arith.constant 0 : index
    %c0_14 = arith.constant 0 : index
    %27 = vector.load %arg6[%c0_13, %c0_14] : memref<264x256xbf16, #tpu.memory_space<vmem>>, vector<264x256xbf16>
    %cst_15 = arith.constant dense<0.000000e+00> : vector<2x256xf32>
    %28 = tpu.matmul %0, %27, %cst_15 {dimension_numbers = #tpu.dot_dimension_numbers<[1], [0], [0], [1], [0, 0, 1, 1], [], []>} : vector<2x264xbf16>, vector<264x256xbf16>, vector<2x256xf32> -> vector<2x256xf32>
    %c0_16 = arith.constant 0 : index
    %c0_17 = arith.constant 0 : index
    %29 = vector.load %arg7[%c0_16, %c0_17] : memref<1x256xf32, #tpu.memory_space<vmem>>, vector<1x256xf32>
    %30 = vector.broadcast %29 : vector<1x256xf32> to vector<2x256xf32>
    %31 = arith.addf %28, %30 : vector<2x256xf32>
    %c0_18 = arith.constant 0 : index
    %c0_19 = arith.constant 0 : index
    %32 = vector.load %arg8[%c0_18, %c0_19] : memref<32x256xf32, #tpu.memory_space<vmem>>, vector<32x256xf32>
    %cst_20 = arith.constant dense<0.000000e+00> : vector<2x256xf32>
    %33 = tpu.matmul %25, %32, %cst_20 {dimension_numbers = #tpu.dot_dimension_numbers<[1], [0], [0], [1], [0, 0, 1, 1], [], []>} : vector<2x32xf32>, vector<32x256xf32>, vector<2x256xf32> -> vector<2x256xf32>
    %34 = arith.mulf %33, %31 : vector<2x256xf32>
    %c0_21 = arith.constant 0 : index
    %c0_22 = arith.constant 0 : index
    %35 = vector.load %arg9[%c0_21, %c0_22] : memref<256x32xf32, #tpu.memory_space<vmem>>, vector<256x32xf32>
    %cst_23 = arith.constant dense<0.000000e+00> : vector<2x32xf32>
    %36 = tpu.matmul %34, %35, %cst_23 {dimension_numbers = #tpu.dot_dimension_numbers<[1], [0], [0], [1], [0, 0, 1, 1], [], []>} : vector<2x256xf32>, vector<256x32xf32>, vector<2x32xf32> -> vector<2x32xf32>
    %c0_24 = arith.constant 0 : index
    %c0_25 = arith.constant 0 : index
    %37 = vector.load %arg10[%c0_24, %c0_25] : memref<1x32xf32, #tpu.memory_space<vmem>>, vector<1x32xf32>
    %38 = vector.broadcast %37 : vector<1x32xf32> to vector<2x32xf32>
    %39 = arith.addf %36, %38 : vector<2x32xf32>
    %cst_26 = arith.constant dense<0.000000e+00> : vector<2xf32>
    %40 = vector.multi_reduction <add>, %39, %cst_26 [1] : vector<2x32xf32> to vector<2xf32>
    %41 = vector.shape_cast %40 : vector<2xf32> to vector<2x1xf32>
    %cst_27 = arith.constant 3.200000e+01 : f32
    %42 = vector.broadcast %cst_27 : f32 to vector<2x1xf32>
    %43 = arith.divf %41, %42 : vector<2x1xf32>
    %44 = vector.broadcast %43 : vector<2x1xf32> to vector<2x32xf32>
    %45 = arith.subf %39, %44 : vector<2x32xf32>
    %46 = arith.mulf %45, %45 : vector<2x32xf32>
    %cst_28 = arith.constant dense<0.000000e+00> : vector<2xf32>
    %47 = vector.multi_reduction <add>, %46, %cst_28 [1] : vector<2x32xf32> to vector<2xf32>
    %48 = vector.shape_cast %47 : vector<2xf32> to vector<2x1xf32>
    %cst_29 = arith.constant 3.200000e+01 : f32
    %49 = vector.broadcast %cst_29 : f32 to vector<2x1xf32>
    %50 = arith.divf %48, %49 : vector<2x1xf32>
    %cst_30 = arith.constant 9.99999974E-6 : f32
    %51 = vector.broadcast %cst_30 : f32 to vector<2x1xf32>
    %52 = arith.addf %50, %51 : vector<2x1xf32>
    %53 = math.rsqrt %52 : vector<2x1xf32>
    %54 = vector.broadcast %53 : vector<2x1xf32> to vector<2x32xf32>
    %55 = arith.mulf %45, %54 : vector<2x32xf32>
    %c0_31 = arith.constant 0 : index
    %c0_32 = arith.constant 0 : index
    %56 = vector.load %arg11[%c0_31, %c0_32] : memref<1x32xf32, #tpu.memory_space<vmem>>, vector<1x32xf32>
    %57 = vector.broadcast %56 : vector<1x32xf32> to vector<2x32xf32>
    %58 = arith.mulf %55, %57 : vector<2x32xf32>
    %c0_33 = arith.constant 0 : index
    %c0_34 = arith.constant 0 : index
    %59 = vector.load %arg12[%c0_33, %c0_34] : memref<1x32xf32, #tpu.memory_space<vmem>>, vector<1x32xf32>
    %60 = vector.broadcast %59 : vector<1x32xf32> to vector<2x32xf32>
    %61 = arith.addf %58, %60 : vector<2x32xf32>
    %c0_35 = arith.constant 0 : index
    %c0_36 = arith.constant 0 : index
    %62 = vector.load %arg13[%c0_35, %c0_36] : memref<32x32xf32, #tpu.memory_space<vmem>>, vector<32x32xf32>
    %cst_37 = arith.constant dense<0.000000e+00> : vector<2x32xf32>
    %63 = tpu.matmul %61, %62, %cst_37 {dimension_numbers = #tpu.dot_dimension_numbers<[1], [0], [0], [1], [0, 0, 1, 1], [], []>} : vector<2x32xf32>, vector<32x32xf32>, vector<2x32xf32> -> vector<2x32xf32>
    %c0_38 = arith.constant 0 : index
    %c0_39 = arith.constant 0 : index
    %64 = vector.load %arg14[%c0_38, %c0_39] : memref<1x32xf32, #tpu.memory_space<vmem>>, vector<1x32xf32>
    %65 = vector.broadcast %64 : vector<1x32xf32> to vector<2x32xf32>
    %66 = arith.addf %63, %65 : vector<2x32xf32>
    %c0_40 = arith.constant 0 : index
    %c0_41 = arith.constant 0 : index
    %67 = vector.load %arg15[%c0_40, %c0_41] : memref<2x32xf32, #tpu.memory_space<vmem>>, vector<2x32xf32>
    tpu.vector_store %arg15[%c0_40, %c0_41], %66 {strides = array<i32>} : memref<2x32xf32, #tpu.memory_space<vmem>>, vector<2x32xf32>,
    return
  }
  func.func @transform_0(%arg0: i32) -> (i32, i32) {
    %c0_i32 = arith.constant 0 : i32
    %c0_i32_0 = arith.constant 0 : i32
    return %arg0, %c0_i32 : i32, i32
  }
  func.func @transform_1(%arg0: i32) -> (i32, i32) {
    %c0_i32 = arith.constant 0 : i32
    %c0_i32_0 = arith.constant 0 : i32
    %c0_i32_1 = arith.constant 0 : i32
    return %c0_i32, %c0_i32_0 : i32, i32
  }
  func.func @transform_2(%arg0: i32) -> (i32, i32) {
    %c0_i32 = arith.constant 0 : i32
    %c0_i32_0 = arith.constant 0 : i32
    %c0_i32_1 = arith.constant 0 : i32
    return %c0_i32, %c0_i32_0 : i32, i32
  }
  func.func @transform_3(%arg0: i32) -> (i32, i32) {
    %c0_i32 = arith.constant 0 : i32
    %c0_i32_0 = arith.constant 0 : i32
    %c0_i32_1 = arith.constant 0 : i32
    return %c0_i32, %c0_i32_0 : i32, i32
  }
  func.func @transform_4(%arg0: i32) -> (i32, i32) {
    %c0_i32 = arith.constant 0 : i32
    %c0_i32_0 = arith.constant 0 : i32
    %c0_i32_1 = arith.constant 0 : i32
    return %c0_i32, %c0_i32_0 : i32, i32
  }
  func.func @transform_5(%arg0: i32) -> (i32, i32) {
    %c0_i32 = arith.constant 0 : i32
    %c0_i32_0 = arith.constant 0 : i32
    %c0_i32_1 = arith.constant 0 : i32
    return %c0_i32, %c0_i32_0 : i32, i32
  }
  func.func @transform_6(%arg0: i32) -> (i32, i32) {
    %c0_i32 = arith.constant 0 : i32
    %c0_i32_0 = arith.constant 0 : i32
    %c0_i32_1 = arith.constant 0 : i32
    return %c0_i32, %c0_i32_0 : i32, i32
  }
  func.func @transform_7(%arg0: i32) -> (i32, i32) {
    %c0_i32 = arith.constant 0 : i32
    %c0_i32_0 = arith.constant 0 : i32
    %c0_i32_1 = arith.constant 0 : i32
    return %c0_i32, %c0_i32_0 : i32, i32
  }
  func.func @transform_8(%arg0: i32) -> (i32, i32) {
    %c0_i32 = arith.constant 0 : i32
    %c0_i32_0 = arith.constant 0 : i32
    %c0_i32_1 = arith.constant 0 : i32
    return %c0_i32, %c0_i32_0 : i32, i32
  }
  func.func @transform_9(%arg0: i32) -> (i32, i32) {
    %c0_i32 = arith.constant 0 : i32
    %c0_i32_0 = arith.constant 0 : i32
    %c0_i32_1 = arith.constant 0 : i32
    return %c0_i32, %c0_i32_0 : i32, i32
  }
  func.func @transform_10(%arg0: i32) -> (i32, i32) {
    %c0_i32 = arith.constant 0 : i32
    %c0_i32_0 = arith.constant 0 : i32
    %c0_i32_1 = arith.constant 0 : i32
    return %c0_i32, %c0_i32_0 : i32, i32
  }
  func.func @transform_11(%arg0: i32) -> (i32, i32) {
    %c0_i32 = arith.constant 0 : i32
    %c0_i32_0 = arith.constant 0 : i32
    %c0_i32_1 = arith.constant 0 : i32
    return %c0_i32, %c0_i32_0 : i32, i32
  }
  func.func @transform_12(%arg0: i32) -> (i32, i32) {
    %c0_i32 = arith.constant 0 : i32
    %c0_i32_0 = arith.constant 0 : i32
    %c0_i32_1 = arith.constant 0 : i32
    return %c0_i32, %c0_i32_0 : i32, i32
  }
  func.func @transform_13(%arg0: i32) -> (i32, i32) {
    %c0_i32 = arith.constant 0 : i32
    %c0_i32_0 = arith.constant 0 : i32
    %c0_i32_1 = arith.constant 0 : i32
    return %c0_i32, %c0_i32_0 : i32, i32
  }
  func.func @transform_14(%arg0: i32) -> (i32, i32) {
    %c0_i32 = arith.constant 0 : i32
    %c0_i32_0 = arith.constant 0 : i32
    return %arg0, %c0_i32 : i32, i32
  }
  func.func @transform_15(%arg0: i32) -> (i32, i32) {
    %c0_i32 = arith.constant 0 : i32
    %c0_i32_0 = arith.constant 0 : i32
    return %arg0, %c0_i32 : i32, i32
  }
}

</mosaic_0001>

<llo_original>
// kernel: tpu_custom_call.1
$region0: #{tpu_custom_call.1}
  #allocation0 [shape = 'u32[]', space=smem, size = 0x4, offset = 0x4, fixed_abs, tag = 'smem constant byte address 0x4 - core index']
  #allocation1 [shape = 'u32[144,128]{1,0:T(1,128)}', space=vmem, size = 0x12000, scoped, tag = 'internal scratch']
  %s0 = inlined_call_operand.vmem [shape: bf16[2,264], index: 0, kind: input, shape index: {}]
  %s1 = inlined_call_operand.vmem [shape: bf16[264,32], index: 1, kind: input, shape index: {}]
  %s2 = inlined_call_operand.vmem [shape: f32[1,32], index: 2, kind: input, shape index: {}]
  %s3 = inlined_call_operand.vmem [shape: f32[32,4], index: 3, kind: input, shape index: {}]
  %s4 = inlined_call_operand.vmem [shape: f32[4,32], index: 4, kind: input, shape index: {}]
  %s5 = inlined_call_operand.vmem [shape: bf16[264,256], index: 5, kind: input, shape index: {}]
  %s6 = inlined_call_operand.vmem [shape: f32[1,256], index: 6, kind: input, shape index: {}]
  %s7 = inlined_call_operand.vmem [shape: f32[32,256], index: 7, kind: input, shape index: {}]
  %s8 = inlined_call_operand.vmem [shape: f32[256,32], index: 8, kind: input, shape index: {}]
  %s9 = inlined_call_operand.vmem [shape: f32[1,32], index: 9, kind: input, shape index: {}]
  %s10 = inlined_call_operand.vmem [shape: f32[1,32], index: 10, kind: input, shape index: {}]
  %s11 = inlined_call_operand.vmem [shape: f32[1,32], index: 11, kind: input, shape index: {}]
  %s12 = inlined_call_operand.vmem [shape: f32[32,32], index: 12, kind: input, shape index: {}]
  %s13 = inlined_call_operand.vmem [shape: f32[1,32], index: 13, kind: input, shape index: {}]
  %s14 = inlined_call_operand.hbm [shape: f32[2,32], index: 14, kind: output, shape index: {0}]
  %s15 = inlined_call_operand.hbm [shape: f32[2,32], index: 15, kind: output, shape index: {1}]
  %16 = xla_tuple %s14, %s15
  %s17 = sld [smem:[#allocation0]]
  $region74: #{tpu_custom_call.1} parent=0
    _
  %s19 = ssub.s32 1, %s17
  %s20 = scalar_select 0, %s19, %s17
  $region1: #{tpu_custom_call.1} parent=0
    #allocation2 [shape = 'u8[1024]{0}', space=vmem, size = 0x400, scoped, tag = 'output window, operand 0, single buffered']
    #allocation3 [shape = 's32[1]{0}', space=sflag, size = 0x4, scoped, tag = 'scoped memory for tpu_custom_call.1']
    #allocation4 [shape = 'u8[1024]{0}', space=vmem, size = 0x400, scoped, tag = 'output window, operand 1, single buffered']
    #allocation5 [shape = 's32[1]{0}', space=sflag, size = 0x4, scoped, tag = 'scoped memory for tpu_custom_call.1']
    %21 = vsyncpa [#allocation3], 0
    %22 = vsyncpa [#allocation5], 0
    // Predicated region
    $region2: #{tpu_custom_call.1} parent=1 // pred_check
      _
    $region3: #{tpu_custom_call.1} parent=1 // pred_check_branch
      %24 = sbr.rel (0) target = $region5
    $region4: #{tpu_custom_call.1} parent=1 // pred_region
      _
    $region5: #{tpu_custom_call.1} parent=1 // pred_fallthru
      _
    // Predicated region
    $region6: #{tpu_custom_call.1} parent=1 // pred_check
      _
    $region7: #{tpu_custom_call.1} parent=1 // pred_check_branch
      %26 = sbr.rel (0) target = $region9
    $region8: #{tpu_custom_call.1} parent=1 // pred_region
      _
    $region9: #{tpu_custom_call.1} parent=1 // pred_fallthru
      _
    // Predicated region
    $region10: #{tpu_custom_call.1} parent=1 // pred_check
      _
    $region11: #{tpu_custom_call.1} parent=1 // pred_check_branch
      %28 = sbr.rel (0) target = $region13
    $region12: #{tpu_custom_call.1} parent=1 // pred_region
      _
    $region13: #{tpu_custom_call.1} parent=1 // pred_fallthru
      _
    // Predicated region
    $region14: #{tpu_custom_call.1} parent=1 // pred_check
      _
    $region15: #{tpu_custom_call.1} parent=1 // pred_check_branch
      %30 = sbr.rel (0) target = $region17
    $region16: #{tpu_custom_call.1} parent=1 // pred_region
      _
    $region17: #{tpu_custom_call.1} parent=1 // pred_fallthru
      _
    // Predicated region
    $region18: #{tpu_custom_call.1} parent=1 // pred_check
      _
    $region19: #{tpu_custom_call.1} parent=1 // pred_check_branch
      %32 = sbr.rel (0) target = $region21
    $region20: #{tpu_custom_call.1} parent=1 // pred_region
      _
    $region21: #{tpu_custom_call.1} parent=1 // pred_fallthru
      _
    // Predicated region
    $region22: #{tpu_custom_call.1} parent=1 // pred_check
      _
    $region23: #{tpu_custom_call.1} parent=1 // pred_check_branch
      %34 = sbr.rel (0) target = $region25
    $region24: #{tpu_custom_call.1} parent=1 // pred_region
      _
    $region25: #{tpu_custom_call.1} parent=1 // pred_fallthru
      _
    // Predicated region
    $region26: #{tpu_custom_call.1} parent=1 // pred_check
      _
    $region27: #{tpu_custom_call.1} parent=1 // pred_check_branch
      %36 = sbr.rel (0) target = $region29
    $region28: #{tpu_custom_call.1} parent=1 // pred_region
      _
    $region29: #{tpu_custom_call.1} parent=1 // pred_fallthru
      _
    // Predicated region
    $region30: #{tpu_custom_call.1} parent=1 // pred_check
      _
    $region31: #{tpu_custom_call.1} parent=1 // pred_check_branch
      %38 = sbr.rel (0) target = $region33
    $region32: #{tpu_custom_call.1} parent=1 // pred_region
      _
    $region33: #{tpu_custom_call.1} parent=1 // pred_fallthru
      _
    // Predicated region
    $region34: #{tpu_custom_call.1} parent=1 // pred_check
      _
    $region35: #{tpu_custom_call.1} parent=1 // pred_check_branch
      %40 = sbr.rel (0) target = $region37
    $region36: #{tpu_custom_call.1} parent=1 // pred_region
      _
    $region37: #{tpu_custom_call.1} parent=1 // pred_fallthru
      _
    // Predicated region
    $region38: #{tpu_custom_call.1} parent=1 // pred_check
      _
    $region39: #{tpu_custom_call.1} parent=1 // pred_check_branch
      %42 = sbr.rel (0) target = $region41
    $region40: #{tpu_custom_call.1} parent=1 // pred_region
      _
    $region41: #{tpu_custom_call.1} parent=1 // pred_fallthru
      _
    // Predicated region
    $region42: #{tpu_custom_call.1} parent=1 // pred_check
      _
    $region43: #{tpu_custom_call.1} parent=1 // pred_check_branch
      %44 = sbr.rel (0) target = $region45
    $region44: #{tpu_custom_call.1} parent=1 // pred_region
      _
    $region45: #{tpu_custom_call.1} parent=1 // pred_fallthru
      _
    // Predicated region
    $region46: #{tpu_custom_call.1} parent=1 // pred_check
      _
    $region47: #{tpu_custom_call.1} parent=1 // pred_check_branch
      %46 = sbr.rel (0) target = $region49
    $region48: #{tpu_custom_call.1} parent=1 // pred_region
      _
    $region49: #{tpu_custom_call.1} parent=1 // pred_fallthru
      _
    // Predicated region
    $region50: #{tpu_custom_call.1} parent=1 // pred_check
      _
    $region51: #{tpu_custom_call.1} parent=1 // pred_check_branch
      %48 = sbr.rel (0) target = $region53
    $region52: #{tpu_custom_call.1} parent=1 // pred_region
      _
    $region53: #{tpu_custom_call.1} parent=1 // pred_fallthru
      _
    // Predicated region
    $region54: #{tpu_custom_call.1} parent=1 // pred_check
      _
    $region55: #{tpu_custom_call.1} parent=1 // pred_check_branch
      %50 = sbr.rel (0) target = $region57
    $region56: #{tpu_custom_call.1} parent=1 // pred_region
      _
    $region57: #{tpu_custom_call.1} parent=1 // pred_fallthru
      _
    %v52 = vld [vmem:[%s0] sm:$0x7]
    %v53 = vld [vmem:[%s1] sm:$0xf]
    %v54 = vld [vmem:[%s1 + $0x4] sm:$0xf]
    %v55 = vld [vmem:[%s1 + $0x8] sm:$0xf]
    %v56 = vld [vmem:[%s1 + $0xc] sm:$0xf]
    %v57 = vld [vmem:[%s1 + $0x10] sm:$0xf]
    %v58 = vld [vmem:[%s1 + $0x14] sm:$0xf]
    %v59 = vld [vmem:[%s1 + $0x18] sm:$0xf]
    %v60 = vld [vmem:[%s1 + $0x1c] sm:$0xf]
    %v61 = vld [vmem:[%s1 + $0x20] sm:$0xf]
    %v62 = vld [vmem:[%s1 + $0x24] sm:$0xf]
    %v63 = vld [vmem:[%s1 + $0x28] sm:$0xf]
    %v64 = vld [vmem:[%s1 + $0x2c] sm:$0xf]
    %v65 = vld [vmem:[%s1 + $0x30] sm:$0xf]
    %v66 = vld [vmem:[%s1 + $0x34] sm:$0xf]
    %v67 = vld [vmem:[%s1 + $0x38] sm:$0xf]
    %v68 = vld [vmem:[%s1 + $0x3c] sm:$0xf]
    %v69 = vld [vmem:[%s1 + $0x40] sm:$0xf]
    %v70 = vld [vmem:[%s1 + $0x44] sm:$0xf]
    %v71 = vld [vmem:[%s1 + $0x48] sm:$0xf]
    %v72 = vld [vmem:[%s1 + $0x4c] sm:$0xf]
    %v73 = vld [vmem:[%s1 + $0x50] sm:$0xf]
    %v74 = vld [vmem:[%s1 + $0x54] sm:$0xf]
    %v75 = vld [vmem:[%s1 + $0x58] sm:$0xf]
    %v76 = vld [vmem:[%s1 + $0x5c] sm:$0xf]
    %v77 = vld [vmem:[%s1 + $0x60] sm:$0xf]
    %v78 = vld [vmem:[%s1 + $0x64] sm:$0xf]
    %v79 = vld [vmem:[%s1 + $0x68] sm:$0xf]
    %v80 = vld [vmem:[%s1 + $0x6c] sm:$0xf]
    %v81 = vld [vmem:[%s1 + $0x70] sm:$0xf]
    %v82 = vld [vmem:[%s1 + $0x74] sm:$0xf]
    %v83 = vld [vmem:[%s1 + $0x78] sm:$0xf]
    %v84 = vld [vmem:[%s1 + $0x7c] sm:$0xf]
    %v85 = vld [vmem:[%s1 + $0x80] sm:$0xf]
    %v86 = vld [vmem:[%s2] sm:$0x1]
    %v88 = vlaneseq
    %v89 = vshrl.u32 %v88, 7
    %v90 = vsub.s32 0, %v89
    %v91 = vrot.slane %v86, %v90
    %v95 = vunpack.c.l.s4 1966171168
    %v96 = vunpack.c.0.s8 %v95
    %v97 = vlaneseq
    %v98 = vshrl.u32 %v97, 7
    %v99 = vsub.s32 %v96, %v98
    %v100 = vrot.slane %v52, %v99
    %v101 = vcombine.high %v100, %v100
    %v103 = vunpack.c.l.s4 1966171168
    %v104 = vunpack.c.0.s8 %v103
    %v105 = vlaneseq
    %v106 = vshrl.u32 %v105, 7
    %v107 = vsub.s32 %v104, %v106
    %v108 = vrot.slane %v100, %v107
    %v110 = vunpack.c.l.s4 1966171168
    %v111 = vunpack.c.0.s8 %v110
    %v112 = vlaneseq
    %v113 = vshrl.u32 %v112, 7
    %v114 = vsub.s32 %v111, %v113
    %v115 = vrot.slane %v101, %v114
    %v116 = vcombine.high %v108, %v108
    %v152 = vunpack.c.l.b16 %v53
    %v153 = vunpack.c.l.b16 %v54
    %v154 = vunpack.c.l.b16 %v55
    %v155 = vunpack.c.l.b16 %v56
    %v156 = vunpack.c.l.b16 %v57
    %v157 = vunpack.c.l.b16 %v58
    %v158 = vunpack.c.l.b16 %v59
    %v159 = vunpack.c.l.b16 %v60
    %v160 = vunpack.c.l.b16 %v61
    %v161 = vunpack.c.l.b16 %v62
    %v162 = vunpack.c.l.b16 %v63
    %v163 = vunpack.c.l.b16 %v64
    %v164 = vunpack.c.l.b16 %v65
    %v165 = vunpack.c.l.b16 %v66
    %v166 = vunpack.c.l.b16 %v67
    %v167 = vunpack.c.l.b16 %v68
    %v168 = vunpack.c.l.b16 %v69
    %v169 = vunpack.c.l.b16 %v70
    %v170 = vunpack.c.l.b16 %v71
    %v171 = vunpack.c.l.b16 %v72
    %v172 = vunpack.c.l.b16 %v73
    %v173 = vunpack.c.l.b16 %v74
    %v174 = vunpack.c.l.b16 %v75
    %v175 = vunpack.c.l.b16 %v76
    %v176 = vunpack.c.l.b16 %v77
    %v177 = vunpack.c.l.b16 %v78
    %v178 = vunpack.c.l.b16 %v79
    %v179 = vunpack.c.l.b16 %v80
    %v180 = vunpack.c.l.b16 %v81
    %v181 = vunpack.c.l.b16 %v82
    %v182 = vunpack.c.l.b16 %v83
    %v183 = vunpack.c.l.b16 %v84
    %v184 = vunpack.c.l.b16 %v85
    %v185 = vpack.c.b16 %v153, %v152
    %v186 = vpack.c.b16 %v155, %v154
    %v187 = vpack.c.b16 %v157, %v156
    %v188 = vpack.c.b16 %v159, %v158
    %v189 = vpack.c.b16 %v161, %v160
    %v190 = vpack.c.b16 %v163, %v162
    %v191 = vpack.c.b16 %v165, %v164
    %v192 = vpack.c.b16 %v167, %v166
    %v193 = vpack.c.b16 %v169, %v168
    %v194 = vpack.c.b16 %v171, %v170
    %v195 = vpack.c.b16 %v173, %v172
    %v196 = vpack.c.b16 %v175, %v174
    %v197 = vpack.c.b16 %v177, %v176
    %v198 = vpack.c.b16 %v179, %v178
    %v199 = vpack.c.b16 %v181, %v180
    %v200 = vpack.c.b16 %v183, %v182
    %v201 = vpack.c.b16 %v184, %v184
    %vm218 = vcmask 64512
    %v220 = vsel %vm218, %v116, 0
    %vm222 = vcmask 1043456
    %v224 = vsel %vm222, %v201, 0
    %226 = vmatprep.subr.bf16.mxu0 0
    %227 = vmatpush1.bf16.msra.mxu0 %v185
    %228 = vmatprep.subr.bf16.mxu0 0
    %229 = vmatpush1.bf16.msra.mxu0 %v186
    %230 = vmatprep.subr.bf16.mxu0 0
    %231 = vmatpush1.bf16.msra.mxu0 %v187
    %232 = vmatprep.subr.bf16.mxu0 0
    %233 = vmatpush1.bf16.msra.mxu0 %v188
    %234 = vmatprep.subr.bf16.mxu0 0
    %235 = vmatpush1.bf16.msra.mxu0 %v189
    %236 = vmatprep.subr.bf16.mxu0 0
    %237 = vmatpush1.bf16.msra.mxu0 %v190
    %238 = vmatprep.subr.bf16.mxu0 0
    %239 = vmatpush1.bf16.msra.mxu0 %v191
    %240 = vmatprep.subr.bf16.mxu0 0
    %241 = vmatpush1.bf16.msra.mxu0 %v192
    %242 = vmatprep.subr.bf16.mxu0 0
    %243 = vmatpush1.bf16.msra.mxu0 %v193
    %244 = vmatprep.subr.bf16.mxu0 0
    %245 = vmatpush1.bf16.msra.mxu0 %v194
    %246 = vmatprep.subr.bf16.mxu0 0
    %247 = vmatpush1.bf16.msra.mxu0 %v195
    %248 = vmatprep.subr.bf16.mxu0 0
    %249 = vmatpush1.bf16.msra.mxu0 %v196
    %250 = vmatprep.subr.bf16.mxu0 0
    %251 = vmatpush1.bf16.msra.mxu0 %v197
    %252 = vmatprep.subr.bf16.mxu0 0
    %253 = vmatpush1.bf16.msra.mxu0 %v198
    %254 = vmatprep.subr.bf16.mxu0 0
    %255 = vmatpush1.bf16.msra.mxu0 %v199
    %256 = vmatprep.subr.bf16.mxu0 0
    %257 = vmatpush1.bf16.msra.mxu0 %v200
    %258 = vmatprep.mubr.bf16.mxu0 %v115
    %259 = vmatmul.mubr.bf16.gmra.mrb[0].mxu0 %v108
    %v260 = vpop.f32.mrb[0].mxu0
    %v261 = vadd.f32 %v91, %v260
    %v262 = vpop.f32.mrb[0].mxu0
    %v263 = vpop.f32.mrb[0].mxu0
    %v264 = vpop.f32.mrb[0].mxu0
    %265 = vdwg.mxu0
    %266 = vmatprep.subr.bf16.mxu0 0
    %267 = vmatpush1.bf16.msra.mxu0 %v224
    %268 = vmatprep.subr.bf16.mxu0 0
    %269 = vmatpush1.bf16.msra.mxu0 0
    %270 = vmatprep.subr.bf16.mxu0 0
    %271 = vmatpush1.bf16.msra.mxu0 0
    %272 = vmatprep.subr.bf16.mxu0 0
    %273 = vmatpush1.bf16.msra.mxu0 0
    %274 = vmatprep.subr.bf16.mxu0 0
    %275 = vmatpush1.bf16.msra.mxu0 0
    %276 = vmatprep.subr.bf16.mxu0 0
    %277 = vmatpush1.bf16.msra.mxu0 0
    %278 = vmatprep.subr.bf16.mxu0 0
    %279 = vmatpush1.bf16.msra.mxu0 0
    %280 = vmatprep.subr.bf16.mxu0 0
    %281 = vmatpush1.bf16.msra.mxu0 0
    %282 = vmatprep.subr.bf16.mxu0 0
    %283 = vmatpush1.bf16.msra.mxu0 0
    %284 = vmatprep.subr.bf16.mxu0 0
    %285 = vmatpush1.bf16.msra.mxu0 0
    %286 = vmatprep.subr.bf16.mxu0 0
    %287 = vmatpush1.bf16.msra.mxu0 0
    %288 = vmatprep.subr.bf16.mxu0 0
    %289 = vmatpush1.bf16.msra.mxu0 0
    %290 = vmatprep.subr.bf16.mxu0 0
    %291 = vmatpush1.bf16.msra.mxu0 0
    %292 = vmatprep.subr.bf16.mxu0 0
    %293 = vmatpush1.bf16.msra.mxu0 0
    %294 = vmatprep.subr.bf16.mxu0 0
    %295 = vmatpush1.bf16.msra.mxu0 0
    %296 = vmatprep.subr.bf16.mxu0 0
    %297 = vmatpush1.bf16.msra.mxu0 0
    %298 = vmatprep.mubr.bf16.mxu0 0
    %299 = vmatmul.mubr.bf16.gmra.mrb[0].mxu0 %v220
    %v300 = vpop.f32.mrb[0].mxu0
    %v301 = vadd.f32 %v261, %v300
    %v302 = vpop.f32.mrb[0].mxu0
    %v303 = vpop.f32.mrb[0].mxu0
    %v304 = vpop.f32.mrb[0].mxu0
    %305 = vdwg.mxu0
    %307 = vrot.lane.b32.xlu0 %v301, 124
    %v308 = vpop.permute.xlu0 %307
    %310 = vrot.lane.b32.xlu0 %v301, 28
    %v311 = vpop.permute.xlu0 %310
    %vm313 = vcmask 228352
    %v314 = vsel %vm313, %v308, %v311
    %v315 = vmax.f32 %v301, %v314
    %317 = vrot.lane.b32.xlu0 %v315, 120
    %v318 = vpop.permute.xlu0 %317
    %320 = vrot.lane.b32.xlu0 %v315, 24
    %v321 = vpop.permute.xlu0 %320
    %vm323 = vcmask 195584
    %v324 = vsel %vm323, %v318, %v321
    %v325 = vmax.f32 %v315, %v324
    %327 = vrot.lane.b32.xlu0 %v325, 112
    %v328 = vpop.permute.xlu0 %327
    %330 = vrot.lane.b32.xlu0 %v325, 16
    %v331 = vpop.permute.xlu0 %330
    %vm333 = vcmask 130048
    %v334 = vsel %vm333, %v328, %v331
    %v335 = vmax.f32 %v325, %v334
    %v336 = vsub.f32 %v301, %v335
    %v337 = vmul.f32 %v336, 1.442695
    %v338 = vpow.pop %v337
    %v339 = vld [vmem:[%s3] sm:$0xff]
    %v340 = vld [vmem:[%s3 + $0x8] sm:$0xff]
    %v341 = vld [vmem:[%s3 + $0x10] sm:$0xff]
    %v342 = vld [vmem:[%s3 + $0x18] sm:$0xff]
    %vm343 = vcmask 261120
    %v345 = vsel %vm343, %v338, 0
    %347 = vmatprep.subr.mxu0 0.0
    %348 = vmatpush1.msra.mxu0 %v339
    %349 = vmatprep.subr.mxu0 0.0
    %350 = vmatpush1.msra.mxu0 %v340
    %351 = vmatprep.subr.mxu0 0.0
    %352 = vmatpush1.msra.mxu0 %v341
    %353 = vmatprep.subr.mxu0 0.0
    %354 = vmatpush1.msra.mxu0 %v342
    %355 = vmatprep.subr.mxu0 0.0
    %356 = vmatpush1.msra.mxu0 0.0
    %357 = vmatprep.subr.mxu0 0.0
    %358 = vmatpush1.msra.mxu0 0.0
    %359 = vmatprep.subr.mxu0 0.0
    %360 = vmatpush1.msra.mxu0 0.0
    %361 = vmatprep.subr.mxu0 0.0
    %362 = vmatpush1.msra.mxu0 0.0
    %363 = vmatprep.subr.mxu0 0.0
    %364 = vmatpush1.msra.mxu0 0.0
    %365 = vmatprep.subr.mxu0 0.0
    %366 = vmatpush1.msra.mxu0 0.0
    %367 = vmatprep.subr.mxu0 0.0
    %368 = vmatpush1.msra.mxu0 0.0
    %369 = vmatprep.subr.mxu0 0.0
    %370 = vmatpush1.msra.mxu0 0.0
    %371 = vmatprep.subr.mxu0 0.0
    %372 = vmatpush1.msra.mxu0 0.0
    %373 = vmatprep.subr.mxu0 0.0
    %374 = vmatpush1.msra.mxu0 0.0
    %375 = vmatprep.subr.mxu0 0.0
    %376 = vmatpush1.msra.mxu0 0.0
    %377 = vmatprep.subr.mxu0 0.0
    %378 = vmatpush1.msra.mxu0 0.0
    %379 = vmatprep.subr.mxu0 0.0
    %380 = vmatpush1.msra.mxu0 0.0
    %381 = vmatprep.subr.mxu0 0.0
    %382 = vmatpush1.msra.mxu0 0.0
    %383 = vmatprep.subr.mxu0 0.0
    %384 = vmatpush1.msra.mxu0 0.0
    %385 = vmatprep.subr.mxu0 0.0
    %386 = vmatpush1.msra.mxu0 0.0
    %387 = vmatprep.subr.mxu0 0.0
    %388 = vmatpush1.msra.mxu0 0.0
    %389 = vmatprep.subr.mxu0 0.0
    %390 = vmatpush1.msra.mxu0 0.0
    %391 = vmatprep.subr.mxu0 0.0
    %392 = vmatpush1.msra.mxu0 0.0
    %393 = vmatprep.subr.mxu0 0.0
    %394 = vmatpush1.msra.mxu0 0.0
    %395 = vmatprep.subr.mxu0 0.0
    %396 = vmatpush1.msra.mxu0 0.0
    %397 = vmatprep.subr.mxu0 0.0
    %398 = vmatpush1.msra.mxu0 0.0
    %399 = vmatprep.subr.mxu0 0.0
    %400 = vmatpush1.msra.mxu0 0.0
    %401 = vmatprep.subr.mxu0 0.0
    %402 = vmatpush1.msra.mxu0 0.0
    %403 = vmatprep.subr.mxu0 0.0
    %404 = vmatpush1.msra.mxu0 0.0
    %405 = vmatprep.subr.mxu0 0.0
    %406 = vmatpush1.msra.mxu0 0.0
    %407 = vmatprep.subr.mxu0 0.0
    %408 = vmatpush1.msra.mxu0 0.0
    %409 = vmatprep.subr.mxu0 0.0
    %410 = vmatpush1.msra.mxu0 0.0
    %411 = vmatprep.mubr.f32.mxu0 0.0
    %412 = vmatmul.mubr.f32.gmra.mrb[0].mxu0 %v345
    %v413 = vpop.f32.mrb[0].mxu0
    %v414 = vadd.f32 0.0, %v413
    %v415 = vpop.f32.mrb[0].mxu0
    %416 = vdwg.mxu0
    %v417 = vrcp.pop %v414
    %v418 = vld [vmem:[%s4] sm:$0xf]
    %vm419 = vcmask 31744
    %v421 = vsel %vm419, %v417, 0
    %v424 = vsel %vm222, %v418, 0
    %426 = vmatprep.subr.mxu0 0.0
    %427 = vmatpush1.msra.mxu0 %v424
    %428 = vmatprep.subr.mxu0 0.0
    %429 = vmatpush1.msra.mxu0 0.0
    %430 = vmatprep.subr.mxu0 0.0
    %431 = vmatpush1.msra.mxu0 0.0
    %432 = vmatprep.subr.mxu0 0.0
    %433 = vmatpush1.msra.mxu0 0.0
    %434 = vmatprep.subr.mxu0 0.0
    %435 = vmatpush1.msra.mxu0 0.0
    %436 = vmatprep.subr.mxu0 0.0
    %437 = vmatpush1.msra.mxu0 0.0
    %438 = vmatprep.subr.mxu0 0.0
    %439 = vmatpush1.msra.mxu0 0.0
    %440 = vmatprep.subr.mxu0 0.0
    %441 = vmatpush1.msra.mxu0 0.0
    %442 = vmatprep.subr.mxu0 0.0
    %443 = vmatpush1.msra.mxu0 0.0
    %444 = vmatprep.subr.mxu0 0.0
    %445 = vmatpush1.msra.mxu0 0.0
    %446 = vmatprep.subr.mxu0 0.0
    %447 = vmatpush1.msra.mxu0 0.0
    %448 = vmatprep.subr.mxu0 0.0
    %449 = vmatpush1.msra.mxu0 0.0
    %450 = vmatprep.subr.mxu0 0.0
    %451 = vmatpush1.msra.mxu0 0.0
    %452 = vmatprep.subr.mxu0 0.0
    %453 = vmatpush1.msra.mxu0 0.0
    %454 = vmatprep.subr.mxu0 0.0
    %455 = vmatpush1.msra.mxu0 0.0
    %456 = vmatprep.subr.mxu0 0.0
    %457 = vmatpush1.msra.mxu0 0.0
    %458 = vmatprep.subr.mxu0 0.0
    %459 = vmatpush1.msra.mxu0 0.0
    %460 = vmatprep.subr.mxu0 0.0
    %461 = vmatpush1.msra.mxu0 0.0
    %462 = vmatprep.subr.mxu0 0.0
    %463 = vmatpush1.msra.mxu0 0.0
    %464 = vmatprep.subr.mxu0 0.0
    %465 = vmatpush1.msra.mxu0 0.0
    %466 = vmatprep.subr.mxu0 0.0
    %467 = vmatpush1.msra.mxu0 0.0
    %468 = vmatprep.subr.mxu0 0.0
    %469 = vmatpush1.msra.mxu0 0.0
    %470 = vmatprep.subr.mxu0 0.0
    %471 = vmatpush1.msra.mxu0 0.0
    %472 = vmatprep.subr.mxu0 0.0
    %473 = vmatpush1.msra.mxu0 0.0
    %474 = vmatprep.subr.mxu0 0.0
    %475 = vmatpush1.msra.mxu0 0.0
    %476 = vmatprep.subr.mxu0 0.0
    %477 = vmatpush1.msra.mxu0 0.0
    %478 = vmatprep.subr.mxu0 0.0
    %479 = vmatpush1.msra.mxu0 0.0
    %480 = vmatprep.subr.mxu0 0.0
    %481 = vmatpush1.msra.mxu0 0.0
    %482 = vmatprep.subr.mxu0 0.0
    %483 = vmatpush1.msra.mxu0 0.0
    %484 = vmatprep.subr.mxu0 0.0
    %485 = vmatpush1.msra.mxu0 0.0
    %486 = vmatprep.subr.mxu0 0.0
    %487 = vmatpush1.msra.mxu0 0.0
    %488 = vmatprep.subr.mxu0 0.0
    %489 = vmatpush1.msra.mxu0 0.0
    %490 = vmatprep.mubr.f32.mxu0 0.0
    %491 = vmatmul.mubr.f32.gmra.mrb[0].mxu0 %v421
    %v492 = vpop.f32.mrb[0].mxu0
    %v493 = vadd.f32 0.0, %v492
    %v494 = vpop.f32.mrb[0].mxu0
    %495 = vdwg.mxu0
    %v496 = vmul.f32 %v338, %v493
    %vm497 = vcmask 254976
    %498 = vst.msk [vmem:[#allocation4] sm:$0x3] %vm497, %v496
    %v499 = vld [vmem:[%s5] sm:$0xff]
    %v500 = vld [vmem:[%s5 + $0x8] sm:$0xff]
    %v501 = vld [vmem:[%s5 + $0x10] sm:$0xff]
    %v502 = vld [vmem:[%s5 + $0x18] sm:$0xff]
    %v503 = vld [vmem:[%s5 + $0x20] sm:$0xff]
    %v504 = vld [vmem:[%s5 + $0x28] sm:$0xff]
    %v505 = vld [vmem:[%s5 + $0x30] sm:$0xff]
    %v506 = vld [vmem:[%s5 + $0x38] sm:$0xff]
    %v507 = vld [vmem:[%s5 + $0x40] sm:$0xff]
    %v508 = vld [vmem:[%s5 + $0x48] sm:$0xff]
    %v509 = vld [vmem:[%s5 + $0x50] sm:$0xff]
    %v510 = vld [vmem:[%s5 + $0x58] sm:$0xff]
    %v511 = vld [vmem:[%s5 + $0x60] sm:$0xff]
    %v512 = vld [vmem:[%s5 + $0x68] sm:$0xff]
    %v513 = vld [vmem:[%s5 + $0x70] sm:$0xff]
    %v514 = vld [vmem:[%s5 + $0x78] sm:$0xff]
    %v515 = vld [vmem:[%s5 + $0x80] sm:$0xff]
    %v516 = vld [vmem:[%s5 + $0x88] sm:$0xff]
    %v517 = vld [vmem:[%s5 + $0x90] sm:$0xff]
    %v518 = vld [vmem:[%s5 + $0x98] sm:$0xff]
    %v519 = vld [vmem:[%s5 + $0xa0] sm:$0xff]
    %v520 = vld [vmem:[%s5 + $0xa8] sm:$0xff]
    %v521 = vld [vmem:[%s5 + $0xb0] sm:$0xff]
    %v522 = vld [vmem:[%s5 + $0xb8] sm:$0xff]
    %v523 = vld [vmem:[%s5 + $0xc0] sm:$0xff]
    %v524 = vld [vmem:[%s5 + $0xc8] sm:$0xff]
    %v525 = vld [vmem:[%s5 + $0xd0] sm:$0xff]
    %v526 = vld [vmem:[%s5 + $0xd8] sm:$0xff]
    %v527 = vld [vmem:[%s5 + $0xe0] sm:$0xff]
    %v528 = vld [vmem:[%s5 + $0xe8] sm:$0xff]
    %v529 = vld [vmem:[%s5 + $0xf0] sm:$0xff]
    %v530 = vld [vmem:[%s5 + $0xf8] sm:$0xff]
    %v531 = vld [vmem:[%s5 + $0x100] sm:$0xff]
    %v532 = vld [vmem:[%s6] sm:$0x3]
    %v534 = vlaneseq
    %v535 = vshrl.u32 %v534, 7
    %v536 = vsub.s32 0, %v535
    %v537 = vrot.slane %v532, %v536
    %v538 = vlaneseq
    %v539 = vshrl.u32 %v538, 7
    %v540 = vsub.s32 1, %v539
    %v541 = vrot.slane %v532, %v540
    %v577 = vunpack.c.l.b16 %v499
    %v578 = vunpack.c.h.b16 %v499
    %v579 = vunpack.c.l.b16 %v500
    %v580 = vunpack.c.h.b16 %v500
    %v581 = vunpack.c.l.b16 %v501
    %v582 = vunpack.c.h.b16 %v501
    %v583 = vunpack.c.l.b16 %v502
    %v584 = vunpack.c.h.b16 %v502
    %v585 = vunpack.c.l.b16 %v503
    %v586 = vunpack.c.h.b16 %v503
    %v587 = vunpack.c.l.b16 %v504
    %v588 = vunpack.c.h.b16 %v504
    %v589 = vunpack.c.l.b16 %v505
    %v590 = vunpack.c.h.b16 %v505
    %v591 = vunpack.c.l.b16 %v506
    %v592 = vunpack.c.h.b16 %v506
    %v593 = vunpack.c.l.b16 %v507
    %v594 = vunpack.c.h.b16 %v507
    %v595 = vunpack.c.l.b16 %v508
    %v596 = vunpack.c.h.b16 %v508
    %v597 = vunpack.c.l.b16 %v509
    %v598 = vunpack.c.h.b16 %v509
    %v599 = vunpack.c.l.b16 %v510
    %v600 = vunpack.c.h.b16 %v510
    %v601 = vunpack.c.l.b16 %v511
    %v602 = vunpack.c.h.b16 %v511
    %v603 = vunpack.c.l.b16 %v512
    %v604 = vunpack.c.h.b16 %v512
    %v605 = vunpack.c.l.b16 %v513
    %v606 = vunpack.c.h.b16 %v513
    %v607 = vunpack.c.l.b16 %v514
    %v608 = vunpack.c.h.b16 %v514
    %v609 = vunpack.c.l.b16 %v515
    %v610 = vunpack.c.h.b16 %v515
    %v611 = vunpack.c.l.b16 %v516
    %v612 = vunpack.c.h.b16 %v516
    %v613 = vunpack.c.l.b16 %v517
    %v614 = vunpack.c.h.b16 %v517
    %v615 = vunpack.c.l.b16 %v518
    %v616 = vunpack.c.h.b16 %v518
    %v617 = vunpack.c.l.b16 %v519
    %v618 = vunpack.c.h.b16 %v519
    %v619 = vunpack.c.l.b16 %v520
    %v620 = vunpack.c.h.b16 %v520
    %v621 = vunpack.c.l.b16 %v521
    %v622 = vunpack.c.h.b16 %v521
    %v623 = vunpack.c.l.b16 %v522
    %v624 = vunpack.c.h.b16 %v522
    %v625 = vunpack.c.l.b16 %v523
    %v626 = vunpack.c.h.b16 %v523
    %v627 = vunpack.c.l.b16 %v524
    %v628 = vunpack.c.h.b16 %v524
    %v629 = vunpack.c.l.b16 %v525
    %v630 = vunpack.c.h.b16 %v525
    %v631 = vunpack.c.l.b16 %v526
    %v632 = vunpack.c.h.b16 %v526
    %v633 = vunpack.c.l.b16 %v527
    %v634 = vunpack.c.h.b16 %v527
    %v635 = vunpack.c.l.b16 %v528
    %v636 = vunpack.c.h.b16 %v528
    %v637 = vunpack.c.l.b16 %v529
    %v638 = vunpack.c.h.b16 %v529
    %v639 = vunpack.c.l.b16 %v530
    %v640 = vunpack.c.h.b16 %v530
    %v641 = vunpack.c.l.b16 %v531
    %v642 = vunpack.c.h.b16 %v531
    %v643 = vpack.c.b16 %v579, %v577
    %v644 = vpack.c.b16 %v580, %v578
    %v645 = vpack.c.b16 %v583, %v581
    %v646 = vpack.c.b16 %v584, %v582
    %v647 = vpack.c.b16 %v587, %v585
    %v648 = vpack.c.b16 %v588, %v586
    %v649 = vpack.c.b16 %v591, %v589
    %v650 = vpack.c.b16 %v592, %v590
    %v651 = vpack.c.b16 %v595, %v593
    %v652 = vpack.c.b16 %v596, %v594
    %v653 = vpack.c.b16 %v599, %v597
    %v654 = vpack.c.b16 %v600, %v598
    %v655 = vpack.c.b16 %v603, %v601
    %v656 = vpack.c.b16 %v604, %v602
    %v657 = vpack.c.b16 %v607, %v605
    %v658 = vpack.c.b16 %v608, %v606
    %v659 = vpack.c.b16 %v611, %v609
    %v660 = vpack.c.b16 %v612, %v610
    %v661 = vpack.c.b16 %v615, %v613
    %v662 = vpack.c.b16 %v616, %v614
    %v663 = vpack.c.b16 %v619, %v617
    %v664 = vpack.c.b16 %v620, %v618
    %v665 = vpack.c.b16 %v623, %v621
    %v666 = vpack.c.b16 %v624, %v622
    %v667 = vpack.c.b16 %v627, %v625
    %v668 = vpack.c.b16 %v628, %v626
    %v669 = vpack.c.b16 %v631, %v629
    %v670 = vpack.c.b16 %v632, %v630
    %v671 = vpack.c.b16 %v635, %v633
    %v672 = vpack.c.b16 %v636, %v634
    %v673 = vpack.c.b16 %v639, %v637
    %v674 = vpack.c.b16 %v640, %v638
    %v675 = vpack.c.b16 %v641, %v641
    %v676 = vpack.c.b16 %v642, %v642
    %v710 = vsel %vm222, %v675, 0
    %v713 = vsel %vm222, %v676, 0
    %715 = vmatprep.subr.bf16.mxu0 %v644
    %716 = vmatpush1.bf16.msra.mxu0 %v643
    %717 = vmatprep.subr.bf16.mxu0 %v646
    %718 = vmatpush1.bf16.msra.mxu0 %v645
    %719 = vmatprep.subr.bf16.mxu0 %v648
    %720 = vmatpush1.bf16.msra.mxu0 %v647
    %721 = vmatprep.subr.bf16.mxu0 %v650
    %722 = vmatpush1.bf16.msra.mxu0 %v649
    %723 = vmatprep.subr.bf16.mxu0 %v652
    %724 = vmatpush1.bf16.msra.mxu0 %v651
    %725 = vmatprep.subr.bf16.mxu0 %v654
    %726 = vmatpush1.bf16.msra.mxu0 %v653
    %727 = vmatprep.subr.bf16.mxu0 %v656
    %728 = vmatpush1.bf16.msra.mxu0 %v655
    %729 = vmatprep.subr.bf16.mxu0 %v658
    %730 = vmatpush1.bf16.msra.mxu0 %v657
    %731 = vmatprep.subr.bf16.mxu0 %v660
    %732 = vmatpush1.bf16.msra.mxu0 %v659
    %733 = vmatprep.subr.bf16.mxu0 %v662
    %734 = vmatpush1.bf16.msra.mxu0 %v661
    %735 = vmatprep.subr.bf16.mxu0 %v664
    %736 = vmatpush1.bf16.msra.mxu0 %v663
    %737 = vmatprep.subr.bf16.mxu0 %v666
    %738 = vmatpush1.bf16.msra.mxu0 %v665
    %739 = vmatprep.subr.bf16.mxu0 %v668
    %740 = vmatpush1.bf16.msra.mxu0 %v667
    %741 = vmatprep.subr.bf16.mxu0 %v670
    %742 = vmatpush1.bf16.msra.mxu0 %v669
    %743 = vmatprep.subr.bf16.mxu0 %v672
    %744 = vmatpush1.bf16.msra.mxu0 %v671
    %745 = vmatprep.subr.bf16.mxu0 %v674
    %746 = vmatpush1.bf16.msra.mxu0 %v673
    %747 = vmatprep.mubr.bf16.mxu0 %v115
    %748 = vmatmul.mubr.bf16.gmra.mrb[0].mxu0 %v108
    %v749 = vpop.f32.mrb[0].mxu0
    %v750 = vadd.f32 %v537, %v749
    %v751 = vpop.f32.mrb[0].mxu0
    %v752 = vadd.f32 %v541, %v751
    %v753 = vpop.f32.mrb[0].mxu0
    %v754 = vpop.f32.mrb[0].mxu0
    %755 = vdwg.mxu0
    %756 = vmatprep.subr.bf16.mxu0 %v713
    %757 = vmatpush1.bf16.msra.mxu0 %v710
    %758 = vmatprep.subr.bf16.mxu0 0
    %759 = vmatpush1.bf16.msra.mxu0 0
    %760 = vmatprep.subr.bf16.mxu0 0
    %761 = vmatpush1.bf16.msra.mxu0 0
    %762 = vmatprep.subr.bf16.mxu0 0
    %763 = vmatpush1.bf16.msra.mxu0 0
    %764 = vmatprep.subr.bf16.mxu0 0
    %765 = vmatpush1.bf16.msra.mxu0 0
    %766 = vmatprep.subr.bf16.mxu0 0
    %767 = vmatpush1.bf16.msra.mxu0 0
    %768 = vmatprep.subr.bf16.mxu0 0
    %769 = vmatpush1.bf16.msra.mxu0 0
    %770 = vmatprep.subr.bf16.mxu0 0
    %771 = vmatpush1.bf16.msra.mxu0 0
    %772 = vmatprep.subr.bf16.mxu0 0
    %773 = vmatpush1.bf16.msra.mxu0 0
    %774 = vmatprep.subr.bf16.mxu0 0
    %775 = vmatpush1.bf16.msra.mxu0 0
    %776 = vmatprep.subr.bf16.mxu0 0
    %777 = vmatpush1.bf16.msra.mxu0 0
    %778 = vmatprep.subr.bf16.mxu0 0
    %779 = vmatpush1.bf16.msra.mxu0 0
    %780 = vmatprep.subr.bf16.mxu0 0
    %781 = vmatpush1.bf16.msra.mxu0 0
    %782 = vmatprep.subr.bf16.mxu0 0
    %783 = vmatpush1.bf16.msra.mxu0 0
    %784 = vmatprep.subr.bf16.mxu0 0
    %785 = vmatpush1.bf16.msra.mxu0 0
    %786 = vmatprep.subr.bf16.mxu0 0
    %787 = vmatpush1.bf16.msra.mxu0 0
    %788 = vmatprep.mubr.bf16.mxu0 0
    %789 = vmatmul.mubr.bf16.gmra.mrb[0].mxu0 %v220
    %v790 = vpop.f32.mrb[0].mxu0
    %v791 = vadd.f32 %v750, %v790
    %v792 = vpop.f32.mrb[0].mxu0
    %v793 = vadd.f32 %v752, %v792
    %v794 = vpop.f32.mrb[0].mxu0
    %v795 = vpop.f32.mrb[0].mxu0
    %796 = vdwg.mxu0
    %v797 = vld [vmem:[%s7] sm:$0xff]
    %v798 = vld [vmem:[%s7 + $0x8] sm:$0xff]
    %v799 = vld [vmem:[%s7 + $0x10] sm:$0xff]
    %v800 = vld [vmem:[%s7 + $0x18] sm:$0xff]
    %v801 = vld [vmem:[%s7 + $0x20] sm:$0xff]
    %v802 = vld [vmem:[%s7 + $0x28] sm:$0xff]
    %v803 = vld [vmem:[%s7 + $0x30] sm:$0xff]
    %v804 = vld [vmem:[%s7 + $0x38] sm:$0xff]
    %v806 = vsel %vm343, %v496, 0
    %808 = vmatprep.subr.mxu0 %v798
    %809 = vmatpush1.msra.mxu0 %v797
    %810 = vmatprep.subr.mxu0 %v800
    %811 = vmatpush1.msra.mxu0 %v799
    %812 = vmatprep.subr.mxu0 %v802
    %813 = vmatpush1.msra.mxu0 %v801
    %814 = vmatprep.subr.mxu0 %v804
    %815 = vmatpush1.msra.mxu0 %v803
    %816 = vmatprep.subr.mxu0 0.0
    %817 = vmatpush1.msra.mxu0 0.0
    %818 = vmatprep.subr.mxu0 0.0
    %819 = vmatpush1.msra.mxu0 0.0
    %820 = vmatprep.subr.mxu0 0.0
    %821 = vmatpush1.msra.mxu0 0.0
    %822 = vmatprep.subr.mxu0 0.0
    %823 = vmatpush1.msra.mxu0 0.0
    %824 = vmatprep.subr.mxu0 0.0
    %825 = vmatpush1.msra.mxu0 0.0
    %826 = vmatprep.subr.mxu0 0.0
    %827 = vmatpush1.msra.mxu0 0.0
    %828 = vmatprep.subr.mxu0 0.0
    %829 = vmatpush1.msra.mxu0 0.0
    %830 = vmatprep.subr.mxu0 0.0
    %831 = vmatpush1.msra.mxu0 0.0
    %832 = vmatprep.subr.mxu0 0.0
    %833 = vmatpush1.msra.mxu0 0.0
    %834 = vmatprep.subr.mxu0 0.0
    %835 = vmatpush1.msra.mxu0 0.0
    %836 = vmatprep.subr.mxu0 0.0
    %837 = vmatpush1.msra.mxu0 0.0
    %838 = vmatprep.subr.mxu0 0.0
    %839 = vmatpush1.msra.mxu0 0.0
    %840 = vmatprep.subr.mxu0 0.0
    %841 = vmatpush1.msra.mxu0 0.0
    %842 = vmatprep.subr.mxu0 0.0
    %843 = vmatpush1.msra.mxu0 0.0
    %844 = vmatprep.subr.mxu0 0.0
    %845 = vmatpush1.msra.mxu0 0.0
    %846 = vmatprep.subr.mxu0 0.0
    %847 = vmatpush1.msra.mxu0 0.0
    %848 = vmatprep.subr.mxu0 0.0
    %849 = vmatpush1.msra.mxu0 0.0
    %850 = vmatprep.subr.mxu0 0.0
    %851 = vmatpush1.msra.mxu0 0.0
    %852 = vmatprep.subr.mxu0 0.0
    %853 = vmatpush1.msra.mxu0 0.0
    %854 = vmatprep.subr.mxu0 0.0
    %855 = vmatpush1.msra.mxu0 0.0
    %856 = vmatprep.subr.mxu0 0.0
    %857 = vmatpush1.msra.mxu0 0.0
    %858 = vmatprep.subr.mxu0 0.0
    %859 = vmatpush1.msra.mxu0 0.0
    %860 = vmatprep.subr.mxu0 0.0
    %861 = vmatpush1.msra.mxu0 0.0
    %862 = vmatprep.subr.mxu0 0.0
    %863 = vmatpush1.msra.mxu0 0.0
    %864 = vmatprep.subr.mxu0 0.0
    %865 = vmatpush1.msra.mxu0 0.0
    %866 = vmatprep.subr.mxu0 0.0
    %867 = vmatpush1.msra.mxu0 0.0
    %868 = vmatprep.subr.mxu0 0.0
    %869 = vmatpush1.msra.mxu0 0.0
    %870 = vmatprep.subr.mxu0 0.0
    %871 = vmatpush1.msra.mxu0 0.0
    %872 = vmatprep.mubr.f32.mxu0 0.0
    %873 = vmatmul.mubr.f32.gmra.mrb[0].mxu0 %v806
    %v874 = vpop.f32.mrb[0].mxu0
    %v875 = vadd.f32 0.0, %v874
    %v876 = vpop.f32.mrb[0].mxu0
    %v877 = vadd.f32 0.0, %v876
    %878 = vdwg.mxu0
    %v879 = vmul.f32 %v875, %v791
    %v880 = vmul.f32 %v877, %v793
    %v881 = vld [vmem:[%s8] sm:$0xff]
    %v882 = vld [vmem:[%s8 + $0x8] sm:$0xff]
    %v883 = vld [vmem:[%s8 + $0x10] sm:$0xff]
    %v884 = vld [vmem:[%s8 + $0x18] sm:$0xff]
    %v885 = vld [vmem:[%s8 + $0x20] sm:$0xff]
    %v886 = vld [vmem:[%s8 + $0x28] sm:$0xff]
    %v887 = vld [vmem:[%s8 + $0x30] sm:$0xff]
    %v888 = vld [vmem:[%s8 + $0x38] sm:$0xff]
    %v889 = vld [vmem:[%s8 + $0x40] sm:$0xff]
    %v890 = vld [vmem:[%s8 + $0x48] sm:$0xff]
    %v891 = vld [vmem:[%s8 + $0x50] sm:$0xff]
    %v892 = vld [vmem:[%s8 + $0x58] sm:$0xff]
    %v893 = vld [vmem:[%s8 + $0x60] sm:$0xff]
    %v894 = vld [vmem:[%s8 + $0x68] sm:$0xff]
    %v895 = vld [vmem:[%s8 + $0x70] sm:$0xff]
    %v896 = vld [vmem:[%s8 + $0x78] sm:$0xff]
    %v897 = vld [vmem:[%s8 + $0x80] sm:$0xff]
    %v898 = vld [vmem:[%s8 + $0x88] sm:$0xff]
    %v899 = vld [vmem:[%s8 + $0x90] sm:$0xff]
    %v900 = vld [vmem:[%s8 + $0x98] sm:$0xff]
    %v901 = vld [vmem:[%s8 + $0xa0] sm:$0xff]
    %v902 = vld [vmem:[%s8 + $0xa8] sm:$0xff]
    %v903 = vld [vmem:[%s8 + $0xb0] sm:$0xff]
    %v904 = vld [vmem:[%s8 + $0xb8] sm:$0xff]
    %v905 = vld [vmem:[%s8 + $0xc0] sm:$0xff]
    %v906 = vld [vmem:[%s8 + $0xc8] sm:$0xff]
    %v907 = vld [vmem:[%s8 + $0xd0] sm:$0xff]
    %v908 = vld [vmem:[%s8 + $0xd8] sm:$0xff]
    %v909 = vld [vmem:[%s8 + $0xe0] sm:$0xff]
    %v910 = vld [vmem:[%s8 + $0xe8] sm:$0xff]
    %v911 = vld [vmem:[%s8 + $0xf0] sm:$0xff]
    %v912 = vld [vmem:[%s8 + $0xf8] sm:$0xff]
    %v913 = vld [vmem:[%s9] sm:$0x1]
    %v915 = vlaneseq
    %v916 = vshrl.u32 %v915, 7
    %v917 = vsub.s32 0, %v916
    %v918 = vrot.slane %v913, %v917
    %920 = vmatprep.subr.mxu0 0.0
    %921 = vmatpush1.msra.mxu0 %v881
    %922 = vmatprep.subr.mxu0 0.0
    %923 = vmatpush1.msra.mxu0 %v882
    %924 = vmatprep.subr.mxu0 0.0
    %925 = vmatpush1.msra.mxu0 %v883
    %926 = vmatprep.subr.mxu0 0.0
    %927 = vmatpush1.msra.mxu0 %v884
    %928 = vmatprep.subr.mxu0 0.0
    %929 = vmatpush1.msra.mxu0 %v885
    %930 = vmatprep.subr.mxu0 0.0
    %931 = vmatpush1.msra.mxu0 %v886
    %932 = vmatprep.subr.mxu0 0.0
    %933 = vmatpush1.msra.mxu0 %v887
    %934 = vmatprep.subr.mxu0 0.0
    %935 = vmatpush1.msra.mxu0 %v888
    %936 = vmatprep.subr.mxu0 0.0
    %937 = vmatpush1.msra.mxu0 %v889
    %938 = vmatprep.subr.mxu0 0.0
    %939 = vmatpush1.msra.mxu0 %v890
    %940 = vmatprep.subr.mxu0 0.0
    %941 = vmatpush1.msra.mxu0 %v891
    %942 = vmatprep.subr.mxu0 0.0
    %943 = vmatpush1.msra.mxu0 %v892
    %944 = vmatprep.subr.mxu0 0.0
    %945 = vmatpush1.msra.mxu0 %v893
    %946 = vmatprep.subr.mxu0 0.0
    %947 = vmatpush1.msra.mxu0 %v894
    %948 = vmatprep.subr.mxu0 0.0
    %949 = vmatpush1.msra.mxu0 %v895
    %950 = vmatprep.subr.mxu0 0.0
    %951 = vmatpush1.msra.mxu0 %v896
    %952 = vmatprep.subr.mxu0 0.0
    %953 = vmatpush1.msra.mxu0 %v897
    %954 = vmatprep.subr.mxu0 0.0
    %955 = vmatpush1.msra.mxu0 %v898
    %956 = vmatprep.subr.mxu0 0.0
    %957 = vmatpush1.msra.mxu0 %v899
    %958 = vmatprep.subr.mxu0 0.0
    %959 = vmatpush1.msra.mxu0 %v900
    %960 = vmatprep.subr.mxu0 0.0
    %961 = vmatpush1.msra.mxu0 %v901
    %962 = vmatprep.subr.mxu0 0.0
    %963 = vmatpush1.msra.mxu0 %v902
    %964 = vmatprep.subr.mxu0 0.0
    %965 = vmatpush1.msra.mxu0 %v903
    %966 = vmatprep.subr.mxu0 0.0
    %967 = vmatpush1.msra.mxu0 %v904
    %968 = vmatprep.subr.mxu0 0.0
    %969 = vmatpush1.msra.mxu0 %v905
    %970 = vmatprep.subr.mxu0 0.0
    %971 = vmatpush1.msra.mxu0 %v906
    %972 = vmatprep.subr.mxu0 0.0
    %973 = vmatpush1.msra.mxu0 %v907
    %974 = vmatprep.subr.mxu0 0.0
    %975 = vmatpush1.msra.mxu0 %v908
    %976 = vmatprep.subr.mxu0 0.0
    %977 = vmatpush1.msra.mxu0 %v909
    %978 = vmatprep.subr.mxu0 0.0
    %979 = vmatpush1.msra.mxu0 %v910
    %980 = vmatprep.subr.mxu0 0.0
    %981 = vmatpush1.msra.mxu0 %v911
    %982 = vmatprep.subr.mxu0 0.0
    %983 = vmatpush1.msra.mxu0 %v912
    %984 = vmatprep.mubr.f32.mxu0 %v880
    %985 = vmatmul.mubr.f32.gmra.mrb[0].mxu0 %v879
    %v986 = vpop.f32.mrb[0].mxu0
    %v987 = vadd.f32 %v918, %v986
    %v988 = vpop.f32.mrb[0].mxu0
    %989 = vdwg.mxu0
    %v990 = vsel %vm497, %v987, 0.0
    %991 = vadd.xlane.f32.xlu0 %v990
    %v992 = vpop.xlane.xlu0 %991
    %v993 = vrcp.pop 32.0
    %v994 = vmul.f32 %v992, %v993
    %v995 = vsub.f32 %v987, %v994
    %v996 = vmul.f32 %v995, %v995
    %v997 = vsel %vm497, %v996, 0.0
    %998 = vadd.xlane.f32.xlu0 %v997
    %v999 = vpop.xlane.xlu0 %998
    %v1000 = vmul.f32 %v999, %v993
    %v1001 = vadd.f32 %v1000, 1e-05
    %v1002 = vrsqrt.pop %v1001
    %v1003 = vmul.f32 %v995, %v1002
    %v1004 = vld [vmem:[%s10] sm:$0x1]
    %v1006 = vlaneseq
    %v1007 = vshrl.u32 %v1006, 7
    %v1008 = vsub.s32 0, %v1007
    %v1009 = vrot.slane %v1004, %v1008
    %v1011 = vmul.f32 %v1003, %v1009
    %v1012 = vld [vmem:[%s11] sm:$0x1]
    %v1014 = vlaneseq
    %v1015 = vshrl.u32 %v1014, 7
    %v1016 = vsub.s32 0, %v1015
    %v1017 = vrot.slane %v1012, %v1016
    %v1019 = vadd.f32 %v1011, %v1017
    %v1020 = vld [vmem:[%s12] sm:$0xff]
    %v1021 = vld [vmem:[%s12 + $0x8] sm:$0xff]
    %v1022 = vld [vmem:[%s12 + $0x10] sm:$0xff]
    %v1023 = vld [vmem:[%s12 + $0x18] sm:$0xff]
    %v1024 = vld [vmem:[%s13] sm:$0x1]
    %v1026 = vlaneseq
    %v1027 = vshrl.u32 %v1026, 7
    %v1028 = vsub.s32 0, %v1027
    %v1029 = vrot.slane %v1024, %v1028
    %v1032 = vsel %vm343, %v1019, 0
    %1034 = vmatprep.subr.mxu0 0.0
    %1035 = vmatpush1.msra.mxu0 %v1020
    %1036 = vmatprep.subr.mxu0 0.0
    %1037 = vmatpush1.msra.mxu0 %v1021
    %1038 = vmatprep.subr.mxu0 0.0
    %1039 = vmatpush1.msra.mxu0 %v1022
    %1040 = vmatprep.subr.mxu0 0.0
    %1041 = vmatpush1.msra.mxu0 %v1023
    %1042 = vmatprep.subr.mxu0 0.0
    %1043 = vmatpush1.msra.mxu0 0.0
    %1044 = vmatprep.subr.mxu0 0.0
    %1045 = vmatpush1.msra.mxu0 0.0
    %1046 = vmatprep.subr.mxu0 0.0
    %1047 = vmatpush1.msra.mxu0 0.0
    %1048 = vmatprep.subr.mxu0 0.0
    %1049 = vmatpush1.msra.mxu0 0.0
    %1050 = vmatprep.subr.mxu0 0.0
    %1051 = vmatpush1.msra.mxu0 0.0
    %1052 = vmatprep.subr.mxu0 0.0
    %1053 = vmatpush1.msra.mxu0 0.0
    %1054 = vmatprep.subr.mxu0 0.0
    %1055 = vmatpush1.msra.mxu0 0.0
    %1056 = vmatprep.subr.mxu0 0.0
    %1057 = vmatpush1.msra.mxu0 0.0
    %1058 = vmatprep.subr.mxu0 0.0
    %1059 = vmatpush1.msra.mxu0 0.0
    %1060 = vmatprep.subr.mxu0 0.0
    %1061 = vmatpush1.msra.mxu0 0.0
    %1062 = vmatprep.subr.mxu0 0.0
    %1063 = vmatpush1.msra.mxu0 0.0
    %1064 = vmatprep.subr.mxu0 0.0
    %1065 = vmatpush1.msra.mxu0 0.0
    %1066 = vmatprep.subr.mxu0 0.0
    %1067 = vmatpush1.msra.mxu0 0.0
    %1068 = vmatprep.subr.mxu0 0.0
    %1069 = vmatpush1.msra.mxu0 0.0
    %1070 = vmatprep.subr.mxu0 0.0
    %1071 = vmatpush1.msra.mxu0 0.0
    %1072 = vmatprep.subr.mxu0 0.0
    %1073 = vmatpush1.msra.mxu0 0.0
    %1074 = vmatprep.subr.mxu0 0.0
    %1075 = vmatpush1.msra.mxu0 0.0
    %1076 = vmatprep.subr.mxu0 0.0
    %1077 = vmatpush1.msra.mxu0 0.0
    %1078 = vmatprep.subr.mxu0 0.0
    %1079 = vmatpush1.msra.mxu0 0.0
    %1080 = vmatprep.subr.mxu0 0.0
    %1081 = vmatpush1.msra.mxu0 0.0
    %1082 = vmatprep.subr.mxu0 0.0
    %1083 = vmatpush1.msra.mxu0 0.0
    %1084 = vmatprep.subr.mxu0 0.0
    %1085 = vmatpush1.msra.mxu0 0.0
    %1086 = vmatprep.subr.mxu0 0.0
    %1087 = vmatpush1.msra.mxu0 0.0
    %1088 = vmatprep.subr.mxu0 0.0
    %1089 = vmatpush1.msra.mxu0 0.0
    %1090 = vmatprep.subr.mxu0 0.0
    %1091 = vmatpush1.msra.mxu0 0.0
    %1092 = vmatprep.subr.mxu0 0.0
    %1093 = vmatpush1.msra.mxu0 0.0
    %1094 = vmatprep.subr.mxu0 0.0
    %1095 = vmatpush1.msra.mxu0 0.0
    %1096 = vmatprep.subr.mxu0 0.0
    %1097 = vmatpush1.msra.mxu0 0.0
    %1098 = vmatprep.mubr.f32.mxu0 0.0
    %1099 = vmatmul.mubr.f32.gmra.mrb[0].mxu0 %v1032
    %v1100 = vpop.f32.mrb[0].mxu0
    %v1101 = vadd.f32 %v1029, %v1100
    %v1102 = vpop.f32.mrb[0].mxu0
    %1103 = vdwg.mxu0
    %1104 = vst.msk [vmem:[#allocation2] sm:$0x3] %vm497, %v1101
    // Predicated region
    $region58: #{tpu_custom_call.1} parent=1 // pred_check
      _
    $region59: #{tpu_custom_call.1} parent=1 // pred_check_branch
      %1106 = sbr.rel (0) target = $region61
    $region60: #{tpu_custom_call.1} parent=1 // pred_region
      %s1108 = ssub.s32 32, 32
      %1109 = vsyncadd [#allocation3], %s1108
      %s1111 = sshll.u32 [#allocation2], 4
      %s1112 = int_to_ptr.vmem [resolvable:$true] %s1111
      %1114 = dma.vmem_to_hbm [thread:$0]  %s1112, 32, %s14, [#allocation3]
    $region61: #{tpu_custom_call.1} parent=1 // pred_fallthru
      _
    // Predicated region
    $region62: #{tpu_custom_call.1} parent=1 // pred_check
      _
    $region63: #{tpu_custom_call.1} parent=1 // pred_check_branch
      %1116 = sbr.rel (0) target = $region65
    $region64: #{tpu_custom_call.1} parent=1 // pred_region
      %s1118 = ssub.s32 32, 32
      %1119 = vsyncadd [#allocation5], %s1118
      %s1121 = sshll.u32 [#allocation4], 4
      %s1122 = int_to_ptr.vmem [resolvable:$true] %s1121
      %1124 = dma.vmem_to_hbm [thread:$0]  %s1122, 32, %s15, [#allocation5]
    $region65: #{tpu_custom_call.1} parent=1 // pred_fallthru
      _
    // Predicated region
    $region66: #{tpu_custom_call.1} parent=1 // pred_check
      _
    $region67: #{tpu_custom_call.1} parent=1 // pred_check_branch
      %1126 = sbr.rel (0) target = $region69
    $region68: #{tpu_custom_call.1} parent=1 // pred_region
      %1127 = dma.done [#allocation3], 32
    $region69: #{tpu_custom_call.1} parent=1 // pred_fallthru
      _
    // Predicated region
    $region70: #{tpu_custom_call.1} parent=1 // pred_check
      _
    $region71: #{tpu_custom_call.1} parent=1 // pred_check_branch
      %1129 = sbr.rel (0) target = $region73
    $region72: #{tpu_custom_call.1} parent=1 // pred_region
      %1130 = dma.done [#allocation5], 32
    $region73: #{tpu_custom_call.1} parent=1 // pred_fallthru
      _
    %1131 = vsyncpa [#allocation3], 1
    %1132 = vsyncpa [#allocation5], 1

</llo_original>
